<compile_context>
chip_gen: v7x
topology: tpu7x:2x2x1
jax: 0.10.0
libtpu: 0.0.40
codegen_flags: <defaults>
</compile_context>

<pallas_src>
import functools

import jax
import jax.numpy as jnp
from jax import lax
from jax.experimental import pallas as pl
from jax.experimental.pallas import tpu as pltpu

SIMPLE_TRANSFORMER_EMBEDDING_DIM = 32
SIMPLE_TRANSFORMER_OUTPUT_TENSOR = "output_tensor"

D_MODEL = SIMPLE_TRANSFORMER_EMBEDDING_DIM
NHEAD = 2
HEAD_DIM = D_MODEL // NHEAD
DIM_FF = 2048            # nn.TransformerEncoderLayer default dim_feedforward
NUM_LAYERS = 2
LN_EPS = 1e-5
FF_CHUNK = 512           # FFN processed in 4 chunks of 512 lanes
NEG_INF = -1e9           # additive mask value (underflows to exp()==0 in f32)

# Row indices inside the packed (L, 9, D) "small params" operand.
_BQ, _BK, _BV, _BO, _B2, _G1, _BE1, _G2, _BE2 = range(9)
N_SMALL = 9


def _layer_norm(x, gamma, beta):
    mean = jnp.mean(x, axis=-1, keepdims=True)
    var = jnp.mean((x - mean) ** 2, axis=-1, keepdims=True)   # biased, like PyTorch
    return (x - mean) * lax.rsqrt(var + LN_EPS) * gamma + beta


def encoder_layer_kernel(x_ref, mask_ref, w_qkv_ref, w_o_ref, w1_ref, w2t_ref,
                         b1_ref, small_ref, o_ref, x_scr):
    """One encoder layer per grid step; activation stays resident in x_scr.

    Per-layer blocks seen by the kernel:
      x_ref:     (N, D)        f32   (same block every layer)
      mask_ref:  (N, N)        f32   additive block-diagonal batch mask
      w_qkv_ref: (D, 3D)       f32
      w_o_ref:   (D, D)        f32
      w1_ref:    (D, DIM_FF)   bf16
      w2t_ref:   (D, DIM_FF)   bf16  (linear2 weight, already lane-dense)
      b1_ref:    (1, DIM_FF)   f32
      small_ref: (9, D)        f32   packed biases + LayerNorm params
      x_scr:     (N, D)        f32   VMEM scratch, persists across layers
    """
    layer = pl.program_id(0)

    @pl.when(layer == 0)
    def _():
        x_scr[...] = x_ref[...].astype(jnp.float32)

    x = x_scr[...]                                            # (N, D) f32
    mask = mask_ref[...]                                      # (N, N) additive

    sm = small_ref[...]                                       # (9, D)
    b_q = sm[_BQ:_BQ + 1]
    b_v = sm[_BV:_BV + 1]                                     # b_k dropped (no-op)
    b_o = sm[_BO:_BO + 1]
    b2 = sm[_B2:_B2 + 1]
    g1, be1 = sm[_G1:_G1 + 1], sm[_BE1:_BE1 + 1]
    g2, be2 = sm[_G2:_G2 + 1], sm[_BE2:_BE2 + 1]

    # ---- fused QKV in-projection (f32, tiny weights) ------------------------
    qkv = jnp.dot(x, w_qkv_ref[...], preferred_element_type=jnp.float32)  # (N, 3D)
    q = qkv[:, 0 * D_MODEL:1 * D_MODEL] + b_q
    k = qkv[:, 1 * D_MODEL:2 * D_MODEL]        # + b_k omitted: softmax-invariant
    v = qkv[:, 2 * D_MODEL:3 * D_MODEL]        # + b_v moved past the softmax matmul

    scale = 1.0 / (HEAD_DIM ** 0.5)

    # ---- multi-head attention: static lane slices + batch mask --------------
    head_outs = []
    for h in range(NHEAD):                                    # static unroll (2)
        lo, hi = h * HEAD_DIM, (h + 1) * HEAD_DIM
        qh, kh, vh = q[:, lo:hi], k[:, lo:hi], v[:, lo:hi]    # (N, hd)
        s = lax.dot_general(qh, kh, (((1,), (1,)), ((), ())),  # q @ k^T, no transpose
                            preferred_element_type=jnp.float32) * scale   # (N, N)
        s = s + mask
        s = s - jnp.max(s, axis=-1, keepdims=True)
        e = jnp.exp(s)
        p = e * pl.reciprocal(jnp.sum(e, axis=-1, keepdims=True), approx=True)
        head_outs.append(jnp.dot(p, vh, preferred_element_type=jnp.float32))
    attn = jnp.concatenate(head_outs, axis=-1) + b_v          # (N, D)

    # ---- out-proj + residual + LayerNorm 1 -----------------------------------
    attn = jnp.dot(attn, w_o_ref[...], preferred_element_type=jnp.float32) + b_o
    x1 = _layer_norm(x + attn, g1, be1)                       # (N, D) f32

    # ---- FFN, chunked over DIM_FF (bf16 weights, f32 accumulation) -----------
    x1b = x1.astype(jnp.bfloat16)
    ff = jnp.zeros(x1.shape, jnp.float32)
    for c in range(DIM_FF // FF_CHUNK):                       # static unroll (4)
        clo, chi = c * FF_CHUNK, (c + 1) * FF_CHUNK
        h_c = jnp.dot(x1b, w1_ref[:, clo:chi],
                      preferred_element_type=jnp.float32) + b1_ref[:, clo:chi]
        h_c = jnp.maximum(h_c, 0.0)                           # ReLU (f32 VPU)
        ff = ff + lax.dot_general(h_c.astype(jnp.bfloat16), w2t_ref[:, clo:chi],
                                  (((1,), (1,)), ((), ())),   # contract the 512 dim
                                  preferred_element_type=jnp.float32)
    x2 = _layer_norm(x1 + ff + b2, g2, be2)

    x_scr[...] = x2                                           # carry to next layer

    @pl.when(layer == pl.num_programs(0) - 1)
    def _():
        o_ref[...] = x2.astype(o_ref.dtype)


@jax.jit
def simple_transformer_forward(x, params):
    B, S, D = x.shape
    assert D == D_MODEL
    N = B * S
    xf = x.reshape(N, D)                                      # free metadata reshape

    # Block-diagonal additive batch mask (keeps attention within each sequence),
    # computed once per call (~1 KiB) and hoisted out of the layer grid.
    batch_id = jnp.arange(N, dtype=jnp.int32) // S
    mask = jnp.where(batch_id[:, None] == batch_id[None, :],
                     0.0, NEG_INF).astype(jnp.float32)

    grid_spec = pltpu.PrefetchScalarGridSpec(
        num_scalar_prefetch=0,
        grid=(NUM_LAYERS,),
        in_specs=[
            pl.BlockSpec((N, D_MODEL), lambda l: (0, 0)),                     # x
            pl.BlockSpec((N, N), lambda l: (0, 0)),                           # mask
            pl.BlockSpec((None, D_MODEL, 3 * D_MODEL), lambda l: (l, 0, 0)),  # w_qkv
            pl.BlockSpec((None, D_MODEL, D_MODEL), lambda l: (l, 0, 0)),      # w_o
            pl.BlockSpec((None, D_MODEL, DIM_FF), lambda l: (l, 0, 0)),       # w1
            pl.BlockSpec((None, D_MODEL, DIM_FF), lambda l: (l, 0, 0)),       # w2t
            pl.BlockSpec((None, 1, DIM_FF), lambda l: (l, 0, 0)),             # b1
            pl.BlockSpec((None, N_SMALL, D_MODEL), lambda l: (l, 0, 0)),      # small
        ],
        out_specs=pl.BlockSpec((N, D_MODEL), lambda l: (0, 0)),
        scratch_shapes=[pltpu.VMEM((N, D_MODEL), jnp.float32)],
    )

    out = pl.pallas_call(
        encoder_layer_kernel,
        out_shape=jax.ShapeDtypeStruct((N, D_MODEL), x.dtype),
        grid_spec=grid_spec,
        compiler_params=pltpu.CompilerParams(
            dimension_semantics=("arbitrary",),    # layer axis is a carried loop
            vmem_limit_bytes=4 << 20,              # footprint ~0.6 MiB double-buffered
        ),
    )(xf, mask,
      params["w_qkv"], params["w_o"], params["w1"], params["w2t"],
      params["b1"], params["small"])
    return {SIMPLE_TRANSFORMER_OUTPUT_TENSOR: out.reshape(B, S, D)}


def init_params(key):
    """Random params, stacked over layers, in the kernel's packed layout.

    To load a real PyTorch checkpoint: transpose each nn.Linear weight to
    (in, out): w_qkv[l] = in_proj_weight.T (row order [q|k|v]); w_o[l] =
    out_proj.weight.T; w1[l] = linear1.weight.T; w2t[l] = linear2.weight
    (already (D, DIM_FF)); biases / LayerNorm params go into `small` rows.
    """
    std = 0.02
    L = NUM_LAYERS
    ks = jax.random.split(key, 5)
    w_qkv = jax.random.normal(ks[0], (L, D_MODEL, 3 * D_MODEL), jnp.float32) * std
    w_o = jax.random.normal(ks[1], (L, D_MODEL, D_MODEL), jnp.float32) * std
    w1 = (jax.random.normal(ks[2], (L, D_MODEL, DIM_FF), jnp.float32) * std
          ).astype(jnp.bfloat16)
    # linear2 weight stored lane-dense: shape (L, D, DIM_FF)
    w2t = (jax.random.normal(ks[3], (L, D_MODEL, DIM_FF), jnp.float32) * std
           ).astype(jnp.bfloat16)
    b1 = jnp.zeros((L, 1, DIM_FF), jnp.float32)

    small = jnp.zeros((L, N_SMALL, D_MODEL), jnp.float32)
    small = small.at[:, _G1].set(1.0).at[:, _G2].set(1.0)     # LN gammas = 1
    bias = jax.random.normal(ks[4], (L, 4, D_MODEL), jnp.float32) * std
    small = small.at[:, _BQ:_BV + 1].set(bias[:, 0:3])        # q/k/v biases
    small = small.at[:, _BO].set(bias[:, 3])                  # out-proj bias

    return {"w_qkv": w_qkv, "w_o": w_o, "w1": w1, "w2t": w2t,
            "b1": b1, "small": small}


if __name__ == "__main__":
    key = jax.random.PRNGKey(0)
    k_x, k_p = jax.random.split(key)

    B, S = 2, 8
    x = jax.random.normal(k_x, (B, S, D_MODEL), jnp.float32)  # [B, S, D], batch_first
    params = init_params(k_p)

    out = simple_transformer_forward(x, params)
    jax.block_until_ready(out)

    o = out[SIMPLE_TRANSFORMER_OUTPUT_TENSOR]
    assert o.shape == (B, S, D_MODEL) and o.dtype == jnp.float32
    assert bool(jnp.all(jnp.isfinite(o)))
    print("KERNEL_OK")
</pallas_src>

<mosaic_0001>
module attributes {stable_mosaic.version = 11 : i64} {
  func.func @encoder_layer_kernel(%arg0: i32, %arg1: memref<16x32xf32, #tpu.memory_space<vmem>>, %arg2: memref<16x16xf32, #tpu.memory_space<vmem>>, %arg3: memref<1x32x96xf32, #tpu.memory_space<vmem>>, %arg4: memref<1x32x32xf32, #tpu.memory_space<vmem>>, %arg5: memref<1x32x2048xbf16, #tpu.memory_space<vmem>>, %arg6: memref<1x32x2048xbf16, #tpu.memory_space<vmem>>, %arg7: memref<1x1x2048xf32, #tpu.memory_space<vmem>>, %arg8: memref<1x9x32xf32, #tpu.memory_space<vmem>>, %arg9: memref<16x32xf32, #tpu.memory_space<vmem>>, %arg10: memref<16x32xf32, #tpu.memory_space<vmem>>) attributes {dimension_semantics = [#tpu.dimension_semantics<arbitrary>], iteration_bounds = array<i64: 2>, scalar_prefetch = 0 : i64, scratch_operands = 1 : i64, tpu.core_type = #tpu.core_type<tc>, window_params = [{pipeline_mode = #tpu.pipeline_mode<synchronous>, transform_indices = @transform_0, window_bounds = array<i64: 16, 32>}, {pipeline_mode = #tpu.pipeline_mode<synchronous>, transform_indices = @transform_1, window_bounds = array<i64: 16, 16>}, {transform_indices = @transform_2, window_bounds = array<i64: 1, 32, 96>}, {transform_indices = @transform_3, window_bounds = array<i64: 1, 32, 32>}, {transform_indices = @transform_4, window_bounds = array<i64: 1, 32, 2048>}, {transform_indices = @transform_5, window_bounds = array<i64: 1, 32, 2048>}, {transform_indices = @transform_6, window_bounds = array<i64: 1, 1, 2048>}, {transform_indices = @transform_7, window_bounds = array<i64: 1, 9, 32>}, {pipeline_mode = #tpu.pipeline_mode<synchronous>, transform_indices = @transform_8, window_bounds = array<i64: 16, 32>}]} {
    %c0_i32 = arith.constant 0 : i32
    %0 = arith.cmpi eq, %arg0, %c0_i32 : i32
    %1 = arith.extui %0 : i1 to i32
    %c0_i32_0 = arith.constant 0 : i32
    %2 = arith.cmpi ne, %1, %c0_i32_0 : i32
    scf.if %2 {
      %c0_83 = arith.constant 0 : index
      %c0_84 = arith.constant 0 : index
      %177 = vector.load %arg1[%c0_83, %c0_84] : memref<16x32xf32, #tpu.memory_space<vmem>>, vector<16x32xf32>
      %c0_85 = arith.constant 0 : index
      %c0_86 = arith.constant 0 : index
      %178 = vector.load %arg10[%c0_85, %c0_86] : memref<16x32xf32, #tpu.memory_space<vmem>>, vector<16x32xf32>
      tpu.vector_store %arg10[%c0_85, %c0_86], %177 {strides = array<i32>} : memref<16x32xf32, #tpu.memory_space<vmem>>, vector<16x32xf32>,
    } else {
    }
    %c0 = arith.constant 0 : index
    %c0_1 = arith.constant 0 : index
    %3 = vector.load %arg10[%c0, %c0_1] : memref<16x32xf32, #tpu.memory_space<vmem>>, vector<16x32xf32>
    %c0_2 = arith.constant 0 : index
    %c0_3 = arith.constant 0 : index
    %4 = vector.load %arg2[%c0_2, %c0_3] : memref<16x16xf32, #tpu.memory_space<vmem>>, vector<16x16xf32>
    %c0_4 = arith.constant 0 : index
    %c0_5 = arith.constant 0 : index
    %c0_6 = arith.constant 0 : index
    %5 = vector.load %arg8[%c0_4, %c0_5, %c0_6] : memref<1x9x32xf32, #tpu.memory_space<vmem>>, vector<1x9x32xf32>
    %6 = vector.shape_cast %5 : vector<1x9x32xf32> to vector<9x32xf32>
    %7 = vector.extract_strided_slice %6 {offsets = [0, 0], sizes = [1, 32], strides = [1, 1]} : vector<9x32xf32> to vector<1x32xf32>
    %8 = vector.extract_strided_slice %6 {offsets = [2, 0], sizes = [1, 32], strides = [1, 1]} : vector<9x32xf32> to vector<1x32xf32>
    %9 = vector.extract_strided_slice %6 {offsets = [3, 0], sizes = [1, 32], strides = [1, 1]} : vector<9x32xf32> to vector<1x32xf32>
    %10 = vector.extract_strided_slice %6 {offsets = [4, 0], sizes = [1, 32], strides = [1, 1]} : vector<9x32xf32> to vector<1x32xf32>
    %11 = vector.extract_strided_slice %6 {offsets = [5, 0], sizes = [1, 32], strides = [1, 1]} : vector<9x32xf32> to vector<1x32xf32>
    %12 = vector.extract_strided_slice %6 {offsets = [6, 0], sizes = [1, 32], strides = [1, 1]} : vector<9x32xf32> to vector<1x32xf32>
    %13 = vector.extract_strided_slice %6 {offsets = [7, 0], sizes = [1, 32], strides = [1, 1]} : vector<9x32xf32> to vector<1x32xf32>
    %14 = vector.extract_strided_slice %6 {offsets = [8, 0], sizes = [1, 32], strides = [1, 1]} : vector<9x32xf32> to vector<1x32xf32>
    %c0_7 = arith.constant 0 : index
    %c0_8 = arith.constant 0 : index
    %c0_9 = arith.constant 0 : index
    %15 = vector.load %arg3[%c0_7, %c0_8, %c0_9] : memref<1x32x96xf32, #tpu.memory_space<vmem>>, vector<1x32x96xf32>
    %16 = vector.shape_cast %15 : vector<1x32x96xf32> to vector<32x96xf32>
    %cst = arith.constant dense<0.000000e+00> : vector<16x96xf32>
    %17 = tpu.matmul %3, %16, %cst {dimension_numbers = #tpu.dot_dimension_numbers<[1], [0], [0], [1], [0, 0, 1, 1], [], []>} : vector<16x32xf32>, vector<32x96xf32>, vector<16x96xf32> -> vector<16x96xf32>
    %18 = vector.extract_strided_slice %17 {offsets = [0, 0], sizes = [16, 32], strides = [1, 1]} : vector<16x96xf32> to vector<16x32xf32>
    %19 = vector.broadcast %7 : vector<1x32xf32> to vector<16x32xf32>
    %20 = arith.addf %18, %19 : vector<16x32xf32>
    %21 = vector.extract_strided_slice %17 {offsets = [0, 32], sizes = [16, 32], strides = [1, 1]} : vector<16x96xf32> to vector<16x32xf32>
    %22 = vector.extract_strided_slice %17 {offsets = [0, 64], sizes = [16, 32], strides = [1, 1]} : vector<16x96xf32> to vector<16x32xf32>
    %23 = vector.extract_strided_slice %20 {offsets = [0, 0], sizes = [16, 16], strides = [1, 1]} : vector<16x32xf32> to vector<16x16xf32>
    %24 = vector.extract_strided_slice %21 {offsets = [0, 0], sizes = [16, 16], strides = [1, 1]} : vector<16x32xf32> to vector<16x16xf32>
    %25 = vector.extract_strided_slice %22 {offsets = [0, 0], sizes = [16, 16], strides = [1, 1]} : vector<16x32xf32> to vector<16x16xf32>
    %cst_10 = arith.constant dense<0.000000e+00> : vector<16x16xf32>
    %26 = tpu.matmul %23, %24, %cst_10 {dimension_numbers = #tpu.dot_dimension_numbers<[1], [1], [0], [0], [0, 0, 1, 0], [], []>} : vector<16x16xf32>, vector<16x16xf32>, vector<16x16xf32> -> vector<16x16xf32>
    %cst_11 = arith.constant 2.500000e-01 : f32
    %27 = vector.broadcast %cst_11 : f32 to vector<16x16xf32>
    %28 = arith.mulf %26, %27 : vector<16x16xf32>
    %29 = arith.addf %28, %4 : vector<16x16xf32>
    %cst_12 = arith.constant dense<0xFF800000> : vector<16xf32>
    %30 = vector.multi_reduction <maximumf>, %29, %cst_12 [1] : vector<16x16xf32> to vector<16xf32>
    %31 = vector.shape_cast %30 : vector<16xf32> to vector<16x1xf32>
    %32 = vector.broadcast %31 : vector<16x1xf32> to vector<16x16xf32>
    %33 = arith.subf %29, %32 : vector<16x16xf32>
    %34 = math.exp %33 : vector<16x16xf32>
    %cst_13 = arith.constant dense<0.000000e+00> : vector<16xf32>
    %35 = vector.multi_reduction <add>, %34, %cst_13 [1] : vector<16x16xf32> to vector<16xf32>
    %36 = vector.shape_cast %35 : vector<16xf32> to vector<16x1xf32>
    %37 = tpu.reciprocal %36 {approx = true} : vector<16x1xf32> -> vector<16x1xf32>
    %38 = vector.broadcast %37 : vector<16x1xf32> to vector<16x16xf32>
    %39 = arith.mulf %34, %38 : vector<16x16xf32>
    %cst_14 = arith.constant dense<0.000000e+00> : vector<16x16xf32>
    %40 = tpu.matmul %39, %25, %cst_14 {dimension_numbers = #tpu.dot_dimension_numbers<[1], [0], [0], [1], [0, 0, 1, 1], [], []>} : vector<16x16xf32>, vector<16x16xf32>, vector<16x16xf32> -> vector<16x16xf32>
    %41 = vector.extract_strided_slice %20 {offsets = [0, 16], sizes = [16, 16], strides = [1, 1]} : vector<16x32xf32> to vector<16x16xf32>
    %42 = vector.extract_strided_slice %21 {offsets = [0, 16], sizes = [16, 16], strides = [1, 1]} : vector<16x32xf32> to vector<16x16xf32>
    %43 = vector.extract_strided_slice %22 {offsets = [0, 16], sizes = [16, 16], strides = [1, 1]} : vector<16x32xf32> to vector<16x16xf32>
    %cst_15 = arith.constant dense<0.000000e+00> : vector<16x16xf32>
    %44 = tpu.matmul %41, %42, %cst_15 {dimension_numbers = #tpu.dot_dimension_numbers<[1], [1], [0], [0], [0, 0, 1, 0], [], []>} : vector<16x16xf32>, vector<16x16xf32>, vector<16x16xf32> -> vector<16x16xf32>
    %cst_16 = arith.constant 2.500000e-01 : f32
    %45 = vector.broadcast %cst_16 : f32 to vector<16x16xf32>
    %46 = arith.mulf %44, %45 : vector<16x16xf32>
    %47 = arith.addf %46, %4 : vector<16x16xf32>
    %cst_17 = arith.constant dense<0xFF800000> : vector<16xf32>
    %48 = vector.multi_reduction <maximumf>, %47, %cst_17 [1] : vector<16x16xf32> to vector<16xf32>
    %49 = vector.shape_cast %48 : vector<16xf32> to vector<16x1xf32>
    %50 = vector.broadcast %49 : vector<16x1xf32> to vector<16x16xf32>
    %51 = arith.subf %47, %50 : vector<16x16xf32>
    %52 = math.exp %51 : vector<16x16xf32>
    %cst_18 = arith.constant dense<0.000000e+00> : vector<16xf32>
    %53 = vector.multi_reduction <add>, %52, %cst_18 [1] : vector<16x16xf32> to vector<16xf32>
    %54 = vector.shape_cast %53 : vector<16xf32> to vector<16x1xf32>
    %55 = tpu.reciprocal %54 {approx = true} : vector<16x1xf32> -> vector<16x1xf32>
    %56 = vector.broadcast %55 : vector<16x1xf32> to vector<16x16xf32>
    %57 = arith.mulf %52, %56 : vector<16x16xf32>
    %cst_19 = arith.constant dense<0.000000e+00> : vector<16x16xf32>
    %58 = tpu.matmul %57, %43, %cst_19 {dimension_numbers = #tpu.dot_dimension_numbers<[1], [0], [0], [1], [0, 0, 1, 1], [], []>} : vector<16x16xf32>, vector<16x16xf32>, vector<16x16xf32> -> vector<16x16xf32>
    %59 = tpu.concatenate %40, %58 in 1 : vector<16x16xf32>, vector<16x16xf32> -> vector<16x32xf32>
    %60 = vector.broadcast %8 : vector<1x32xf32> to vector<16x32xf32>
    %61 = arith.addf %59, %60 : vector<16x32xf32>
    %c0_20 = arith.constant 0 : index
    %c0_21 = arith.constant 0 : index
    %c0_22 = arith.constant 0 : index
    %62 = vector.load %arg4[%c0_20, %c0_21, %c0_22] : memref<1x32x32xf32, #tpu.memory_space<vmem>>, vector<1x32x32xf32>
    %63 = vector.shape_cast %62 : vector<1x32x32xf32> to vector<32x32xf32>
    %cst_23 = arith.constant dense<0.000000e+00> : vector<16x32xf32>
    %64 = tpu.matmul %61, %63, %cst_23 {dimension_numbers = #tpu.dot_dimension_numbers<[1], [0], [0], [1], [0, 0, 1, 1], [], []>} : vector<16x32xf32>, vector<32x32xf32>, vector<16x32xf32> -> vector<16x32xf32>
    %65 = vector.broadcast %9 : vector<1x32xf32> to vector<16x32xf32>
    %66 = arith.addf %64, %65 : vector<16x32xf32>
    %67 = arith.addf %3, %66 : vector<16x32xf32>
    %cst_24 = arith.constant dense<0.000000e+00> : vector<16xf32>
    %68 = vector.multi_reduction <add>, %67, %cst_24 [1] : vector<16x32xf32> to vector<16xf32>
    %69 = vector.shape_cast %68 : vector<16xf32> to vector<16x1xf32>
    %cst_25 = arith.constant 3.200000e+01 : f32
    %70 = vector.broadcast %cst_25 : f32 to vector<16x1xf32>
    %71 = arith.divf %69, %70 : vector<16x1xf32>
    %72 = vector.broadcast %71 : vector<16x1xf32> to vector<16x32xf32>
    %73 = arith.subf %67, %72 : vector<16x32xf32>
    %74 = arith.mulf %73, %73 : vector<16x32xf32>
    %cst_26 = arith.constant dense<0.000000e+00> : vector<16xf32>
    %75 = vector.multi_reduction <add>, %74, %cst_26 [1] : vector<16x32xf32> to vector<16xf32>
    %76 = vector.shape_cast %75 : vector<16xf32> to vector<16x1xf32>
    %cst_27 = arith.constant 3.200000e+01 : f32
    %77 = vector.broadcast %cst_27 : f32 to vector<16x1xf32>
    %78 = arith.divf %76, %77 : vector<16x1xf32>
    %79 = vector.broadcast %71 : vector<16x1xf32> to vector<16x32xf32>
    %80 = arith.subf %67, %79 : vector<16x32xf32>
    %cst_28 = arith.constant 9.99999974E-6 : f32
    %81 = vector.broadcast %cst_28 : f32 to vector<16x1xf32>
    %82 = arith.addf %78, %81 : vector<16x1xf32>
    %83 = math.rsqrt %82 : vector<16x1xf32>
    %84 = vector.broadcast %83 : vector<16x1xf32> to vector<16x32xf32>
    %85 = arith.mulf %80, %84 : vector<16x32xf32>
    %86 = vector.broadcast %11 : vector<1x32xf32> to vector<16x32xf32>
    %87 = arith.mulf %85, %86 : vector<16x32xf32>
    %88 = vector.broadcast %12 : vector<1x32xf32> to vector<16x32xf32>
    %89 = arith.addf %87, %88 : vector<16x32xf32>
    %90 = arith.truncf %89 : vector<16x32xf32> to vector<16x32xbf16>
    %cst_29 = arith.constant 0.000000e+00 : f32
    %91 = vector.broadcast %cst_29 : f32 to vector<16x32xf32>
    %c0_30 = arith.constant 0 : index
    %c0_31 = arith.constant 0 : index
    %c0_32 = arith.constant 0 : index
    %92 = vector.load %arg5[%c0_30, %c0_31, %c0_32] : memref<1x32x2048xbf16, #tpu.memory_space<vmem>>, vector<1x32x512xbf16>
    %93 = vector.shape_cast %92 : vector<1x32x512xbf16> to vector<32x512xbf16>
    %cst_33 = arith.constant dense<0.000000e+00> : vector<16x512xf32>
    %94 = tpu.matmul %90, %93, %cst_33 {dimension_numbers = #tpu.dot_dimension_numbers<[1], [0], [0], [1], [0, 0, 1, 1], [], []>} : vector<16x32xbf16>, vector<32x512xbf16>, vector<16x512xf32> -> vector<16x512xf32>
    %c0_34 = arith.constant 0 : index
    %c0_35 = arith.constant 0 : index
    %c0_36 = arith.constant 0 : index
    %95 = vector.load %arg7[%c0_34, %c0_35, %c0_36] : memref<1x1x2048xf32, #tpu.memory_space<vmem>>, vector<1x1x512xf32>
    %96 = vector.shape_cast %95 : vector<1x1x512xf32> to vector<1x512xf32>
    %97 = vector.broadcast %96 : vector<1x512xf32> to vector<16x512xf32>
    %98 = arith.addf %94, %97 : vector<16x512xf32>
    %cst_37 = arith.constant 0.000000e+00 : f32
    %99 = vector.broadcast %cst_37 : f32 to vector<16x512xf32>
    %100 = arith.maximumf %98, %99 : vector<16x512xf32>
    %101 = arith.truncf %100 : vector<16x512xf32> to vector<16x512xbf16>
    %c0_38 = arith.constant 0 : index
    %c0_39 = arith.constant 0 : index
    %c0_40 = arith.constant 0 : index
    %102 = vector.load %arg6[%c0_38, %c0_39, %c0_40] : memref<1x32x2048xbf16, #tpu.memory_space<vmem>>, vector<1x32x512xbf16>
    %103 = vector.shape_cast %102 : vector<1x32x512xbf16> to vector<32x512xbf16>
    %cst_41 = arith.constant dense<0.000000e+00> : vector<16x32xf32>
    %104 = tpu.matmul %101, %103, %cst_41 {dimension_numbers = #tpu.dot_dimension_numbers<[1], [1], [0], [0], [0, 0, 1, 0], [], []>} : vector<16x512xbf16>, vector<32x512xbf16>, vector<16x32xf32> -> vector<16x32xf32>
    %105 = arith.addf %91, %104 : vector<16x32xf32>
    %c0_42 = arith.constant 0 : index
    %c0_43 = arith.constant 0 : index
    %c512 = arith.constant 512 : index
    %106 = vector.load %arg5[%c0_42, %c0_43, %c512] : memref<1x32x2048xbf16, #tpu.memory_space<vmem>>, vector<1x32x512xbf16>
    %107 = vector.shape_cast %106 : vector<1x32x512xbf16> to vector<32x512xbf16>
    %cst_44 = arith.constant dense<0.000000e+00> : vector<16x512xf32>
    %108 = tpu.matmul %90, %107, %cst_44 {dimension_numbers = #tpu.dot_dimension_numbers<[1], [0], [0], [1], [0, 0, 1, 1], [], []>} : vector<16x32xbf16>, vector<32x512xbf16>, vector<16x512xf32> -> vector<16x512xf32>
    %c0_45 = arith.constant 0 : index
    %c0_46 = arith.constant 0 : index
    %c512_47 = arith.constant 512 : index
    %109 = vector.load %arg7[%c0_45, %c0_46, %c512_47] : memref<1x1x2048xf32, #tpu.memory_space<vmem>>, vector<1x1x512xf32>
    %110 = vector.shape_cast %109 : vector<1x1x512xf32> to vector<1x512xf32>
    %111 = vector.broadcast %110 : vector<1x512xf32> to vector<16x512xf32>
    %112 = arith.addf %108, %111 : vector<16x512xf32>
    %cst_48 = arith.constant 0.000000e+00 : f32
    %113 = vector.broadcast %cst_48 : f32 to vector<16x512xf32>
    %114 = arith.maximumf %112, %113 : vector<16x512xf32>
    %115 = arith.truncf %114 : vector<16x512xf32> to vector<16x512xbf16>
    %c0_49 = arith.constant 0 : index
    %c0_50 = arith.constant 0 : index
    %c512_51 = arith.constant 512 : index
    %116 = vector.load %arg6[%c0_49, %c0_50, %c512_51] : memref<1x32x2048xbf16, #tpu.memory_space<vmem>>, vector<1x32x512xbf16>
    %117 = vector.shape_cast %116 : vector<1x32x512xbf16> to vector<32x512xbf16>
    %cst_52 = arith.constant dense<0.000000e+00> : vector<16x32xf32>
    %118 = tpu.matmul %115, %117, %cst_52 {dimension_numbers = #tpu.dot_dimension_numbers<[1], [1], [0], [0], [0, 0, 1, 0], [], []>} : vector<16x512xbf16>, vector<32x512xbf16>, vector<16x32xf32> -> vector<16x32xf32>
    %119 = arith.addf %105, %118 : vector<16x32xf32>
    %c0_53 = arith.constant 0 : index
    %c0_54 = arith.constant 0 : index
    %c1024 = arith.constant 1024 : index
    %120 = vector.load %arg5[%c0_53, %c0_54, %c1024] : memref<1x32x2048xbf16, #tpu.memory_space<vmem>>, vector<1x32x512xbf16>
    %121 = vector.shape_cast %120 : vector<1x32x512xbf16> to vector<32x512xbf16>
    %cst_55 = arith.constant dense<0.000000e+00> : vector<16x512xf32>
    %122 = tpu.matmul %90, %121, %cst_55 {dimension_numbers = #tpu.dot_dimension_numbers<[1], [0], [0], [1], [0, 0, 1, 1], [], []>} : vector<16x32xbf16>, vector<32x512xbf16>, vector<16x512xf32> -> vector<16x512xf32>
    %c0_56 = arith.constant 0 : index
    %c0_57 = arith.constant 0 : index
    %c1024_58 = arith.constant 1024 : index
    %123 = vector.load %arg7[%c0_56, %c0_57, %c1024_58] : memref<1x1x2048xf32, #tpu.memory_space<vmem>>, vector<1x1x512xf32>
    %124 = vector.shape_cast %123 : vector<1x1x512xf32> to vector<1x512xf32>
    %125 = vector.broadcast %124 : vector<1x512xf32> to vector<16x512xf32>
    %126 = arith.addf %122, %125 : vector<16x512xf32>
    %cst_59 = arith.constant 0.000000e+00 : f32
    %127 = vector.broadcast %cst_59 : f32 to vector<16x512xf32>
    %128 = arith.maximumf %126, %127 : vector<16x512xf32>
    %129 = arith.truncf %128 : vector<16x512xf32> to vector<16x512xbf16>
    %c0_60 = arith.constant 0 : index
    %c0_61 = arith.constant 0 : index
    %c1024_62 = arith.constant 1024 : index
    %130 = vector.load %arg6[%c0_60, %c0_61, %c1024_62] : memref<1x32x2048xbf16, #tpu.memory_space<vmem>>, vector<1x32x512xbf16>
    %131 = vector.shape_cast %130 : vector<1x32x512xbf16> to vector<32x512xbf16>
    %cst_63 = arith.constant dense<0.000000e+00> : vector<16x32xf32>
    %132 = tpu.matmul %129, %131, %cst_63 {dimension_numbers = #tpu.dot_dimension_numbers<[1], [1], [0], [0], [0, 0, 1, 0], [], []>} : vector<16x512xbf16>, vector<32x512xbf16>, vector<16x32xf32> -> vector<16x32xf32>
    %133 = arith.addf %119, %132 : vector<16x32xf32>
    %c0_64 = arith.constant 0 : index
    %c0_65 = arith.constant 0 : index
    %c1536 = arith.constant 1536 : index
    %134 = vector.load %arg5[%c0_64, %c0_65, %c1536] : memref<1x32x2048xbf16, #tpu.memory_space<vmem>>, vector<1x32x512xbf16>
    %135 = vector.shape_cast %134 : vector<1x32x512xbf16> to vector<32x512xbf16>
    %cst_66 = arith.constant dense<0.000000e+00> : vector<16x512xf32>
    %136 = tpu.matmul %90, %135, %cst_66 {dimension_numbers = #tpu.dot_dimension_numbers<[1], [0], [0], [1], [0, 0, 1, 1], [], []>} : vector<16x32xbf16>, vector<32x512xbf16>, vector<16x512xf32> -> vector<16x512xf32>
    %c0_67 = arith.constant 0 : index
    %c0_68 = arith.constant 0 : index
    %c1536_69 = arith.constant 1536 : index
    %137 = vector.load %arg7[%c0_67, %c0_68, %c1536_69] : memref<1x1x2048xf32, #tpu.memory_space<vmem>>, vector<1x1x512xf32>
    %138 = vector.shape_cast %137 : vector<1x1x512xf32> to vector<1x512xf32>
    %139 = vector.broadcast %138 : vector<1x512xf32> to vector<16x512xf32>
    %140 = arith.addf %136, %139 : vector<16x512xf32>
    %cst_70 = arith.constant 0.000000e+00 : f32
    %141 = vector.broadcast %cst_70 : f32 to vector<16x512xf32>
    %142 = arith.maximumf %140, %141 : vector<16x512xf32>
    %143 = arith.truncf %142 : vector<16x512xf32> to vector<16x512xbf16>
    %c0_71 = arith.constant 0 : index
    %c0_72 = arith.constant 0 : index
    %c1536_73 = arith.constant 1536 : index
    %144 = vector.load %arg6[%c0_71, %c0_72, %c1536_73] : memref<1x32x2048xbf16, #tpu.memory_space<vmem>>, vector<1x32x512xbf16>
    %145 = vector.shape_cast %144 : vector<1x32x512xbf16> to vector<32x512xbf16>
    %cst_74 = arith.constant dense<0.000000e+00> : vector<16x32xf32>
    %146 = tpu.matmul %143, %145, %cst_74 {dimension_numbers = #tpu.dot_dimension_numbers<[1], [1], [0], [0], [0, 0, 1, 0], [], []>} : vector<16x512xbf16>, vector<32x512xbf16>, vector<16x32xf32> -> vector<16x32xf32>
    %147 = arith.addf %133, %146 : vector<16x32xf32>
    %148 = arith.addf %89, %147 : vector<16x32xf32>
    %149 = vector.broadcast %10 : vector<1x32xf32> to vector<16x32xf32>
    %150 = arith.addf %148, %149 : vector<16x32xf32>
    %cst_75 = arith.constant dense<0.000000e+00> : vector<16xf32>
    %151 = vector.multi_reduction <add>, %150, %cst_75 [1] : vector<16x32xf32> to vector<16xf32>
    %152 = vector.shape_cast %151 : vector<16xf32> to vector<16x1xf32>
    %cst_76 = arith.constant 3.200000e+01 : f32
    %153 = vector.broadcast %cst_76 : f32 to vector<16x1xf32>
    %154 = arith.divf %152, %153 : vector<16x1xf32>
    %155 = vector.broadcast %154 : vector<16x1xf32> to vector<16x32xf32>
    %156 = arith.subf %150, %155 : vector<16x32xf32>
    %157 = arith.mulf %156, %156 : vector<16x32xf32>
    %cst_77 = arith.constant dense<0.000000e+00> : vector<16xf32>
    %158 = vector.multi_reduction <add>, %157, %cst_77 [1] : vector<16x32xf32> to vector<16xf32>
    %159 = vector.shape_cast %158 : vector<16xf32> to vector<16x1xf32>
    %cst_78 = arith.constant 3.200000e+01 : f32
    %160 = vector.broadcast %cst_78 : f32 to vector<16x1xf32>
    %161 = arith.divf %159, %160 : vector<16x1xf32>
    %162 = vector.broadcast %154 : vector<16x1xf32> to vector<16x32xf32>
    %163 = arith.subf %150, %162 : vector<16x32xf32>
    %cst_79 = arith.constant 9.99999974E-6 : f32
    %164 = vector.broadcast %cst_79 : f32 to vector<16x1xf32>
    %165 = arith.addf %161, %164 : vector<16x1xf32>
    %166 = math.rsqrt %165 : vector<16x1xf32>
    %167 = vector.broadcast %166 : vector<16x1xf32> to vector<16x32xf32>
    %168 = arith.mulf %163, %167 : vector<16x32xf32>
    %169 = vector.broadcast %13 : vector<1x32xf32> to vector<16x32xf32>
    %170 = arith.mulf %168, %169 : vector<16x32xf32>
    %171 = vector.broadcast %14 : vector<1x32xf32> to vector<16x32xf32>
    %172 = arith.addf %170, %171 : vector<16x32xf32>
    %c0_80 = arith.constant 0 : index
    %c0_81 = arith.constant 0 : index
    %173 = vector.load %arg10[%c0_80, %c0_81] : memref<16x32xf32, #tpu.memory_space<vmem>>, vector<16x32xf32>
    tpu.vector_store %arg10[%c0_80, %c0_81], %172 {strides = array<i32>} : memref<16x32xf32, #tpu.memory_space<vmem>>, vector<16x32xf32>,
    %c1_i32 = arith.constant 1 : i32
    %174 = arith.cmpi eq, %arg0, %c1_i32 : i32
    %175 = arith.extui %174 : i1 to i32
    %c0_i32_82 = arith.constant 0 : i32
    %176 = arith.cmpi ne, %175, %c0_i32_82 : i32
    scf.if %176 {
      %c0_83 = arith.constant 0 : index
      %c0_84 = arith.constant 0 : index
      %177 = vector.load %arg9[%c0_83, %c0_84] : memref<16x32xf32, #tpu.memory_space<vmem>>, vector<16x32xf32>
      tpu.vector_store %arg9[%c0_83, %c0_84], %172 {strides = array<i32>} : memref<16x32xf32, #tpu.memory_space<vmem>>, vector<16x32xf32>,
    } else {
    }
    return
  }
  func.func @transform_0(%arg0: i32) -> (i32, i32) {
    %c0_i32 = arith.constant 0 : i32
    %c0_i32_0 = arith.constant 0 : i32
    %c0_i32_1 = arith.constant 0 : i32
    return %c0_i32, %c0_i32_0 : i32, i32
  }
  func.func @transform_1(%arg0: i32) -> (i32, i32) {
    %c0_i32 = arith.constant 0 : i32
    %c0_i32_0 = arith.constant 0 : i32
    %c0_i32_1 = arith.constant 0 : i32
    return %c0_i32, %c0_i32_0 : i32, i32
  }
  func.func @transform_2(%arg0: i32) -> (i32, i32, i32) {
    %c0_i32 = arith.constant 0 : i32
    %c0_i32_0 = arith.constant 0 : i32
    %c0_i32_1 = arith.constant 0 : i32
    return %arg0, %c0_i32, %c0_i32_0 : i32, i32, i32
  }
  func.func @transform_3(%arg0: i32) -> (i32, i32, i32) {
    %c0_i32 = arith.constant 0 : i32
    %c0_i32_0 = arith.constant 0 : i32
    %c0_i32_1 = arith.constant 0 : i32
    return %arg0, %c0_i32, %c0_i32_0 : i32, i32, i32
  }
  func.func @transform_4(%arg0: i32) -> (i32, i32, i32) {
    %c0_i32 = arith.constant 0 : i32
    %c0_i32_0 = arith.constant 0 : i32
    %c0_i32_1 = arith.constant 0 : i32
    return %arg0, %c0_i32, %c0_i32_0 : i32, i32, i32
  }
  func.func @transform_5(%arg0: i32) -> (i32, i32, i32) {
    %c0_i32 = arith.constant 0 : i32
    %c0_i32_0 = arith.constant 0 : i32
    %c0_i32_1 = arith.constant 0 : i32
    return %arg0, %c0_i32, %c0_i32_0 : i32, i32, i32
  }
  func.func @transform_6(%arg0: i32) -> (i32, i32, i32) {
    %c0_i32 = arith.constant 0 : i32
    %c0_i32_0 = arith.constant 0 : i32
    %c0_i32_1 = arith.constant 0 : i32
    return %arg0, %c0_i32, %c0_i32_0 : i32, i32, i32
  }
  func.func @transform_7(%arg0: i32) -> (i32, i32, i32) {
    %c0_i32 = arith.constant 0 : i32
    %c0_i32_0 = arith.constant 0 : i32
    %c0_i32_1 = arith.constant 0 : i32
    return %arg0, %c0_i32, %c0_i32_0 : i32, i32, i32
  }
  func.func @transform_8(%arg0: i32) -> (i32, i32) {
    %c0_i32 = arith.constant 0 : i32
    %c0_i32_0 = arith.constant 0 : i32
    %c0_i32_1 = arith.constant 0 : i32
    return %c0_i32, %c0_i32_0 : i32, i32
  }
}

</mosaic_0001>

<llo_original>
// kernel: simple_transformer_forward.1
$region0: #{simple_transformer_forward.1}
  #allocation0 [shape = 'u32[]', space=smem, size = 0x4, offset = 0x4, fixed_abs, tag = 'smem constant byte address 0x4 - core index']
  #allocation1 [shape = 'u32[144,128]{1,0:T(1,128)}', space=vmem, size = 0x12000, scoped, tag = 'internal scratch']
  #allocation2 [shape = 'f32[16,32]{1,0:T(8,128)}', space=vmem, size = 0x2000, scoped, tag = 'scratch operand']
  %s0 = inlined_call_operand.hbm [shape: f32[16,32], index: 0, kind: input, shape index: {}]
  %s1 = inlined_call_operand.vmem [shape: f32[16,16], index: 1, kind: input, shape index: {}]
  %s2 = inlined_call_operand.vmem [shape: f32[2,32,96], index: 2, kind: input, shape index: {}]
  %s3 = inlined_call_operand.hbm [shape: f32[2,32,32], index: 3, kind: input, shape index: {}]
  %s4 = inlined_call_operand.hbm [shape: bf16[2,32,2048], index: 4, kind: input, shape index: {}]
  %s5 = inlined_call_operand.hbm [shape: bf16[2,32,2048], index: 5, kind: input, shape index: {}]
  %s6 = inlined_call_operand.vmem [shape: f32[2,1,2048], index: 6, kind: input, shape index: {}]
  %s7 = inlined_call_operand.vmem [shape: f32[2,9,32], index: 7, kind: input, shape index: {}]
  %s8 = inlined_call_operand.hbm [shape: f32[16,32], index: 8, kind: output, shape index: {}]
  %s9 = sld [smem:[#allocation0]]
  $region89: #{simple_transformer_forward.1} parent=0
    _
  %s11 = ssub.s32 1, %s9
  %s12 = scalar_select 0, %s11, %s9
  $region1: #{simple_transformer_forward.1} parent=0
    #allocation3 [shape = 'u8[8192]{0}', space=vmem, size = 0x2000, scoped, tag = 'input window, operand 0, single buffered']
    #allocation4 [shape = 's32[2]{0}', space=sflag, size = 0x8, scoped, tag = 'scoped memory for simple_transformer_forward.1']
    #allocation5 [shape = 's32[2]{0}', space=sflag, size = 0x8, scoped, tag = 'scoped memory for simple_transformer_forward.1']
    #allocation6 [shape = 'u8[32768]{0}', space=vmem, size = 0x8000, scoped, tag = 'input window, operand 3']
    #allocation7 [shape = 's32[2]{0}', space=sflag, size = 0x8, scoped, tag = 'scoped memory for simple_transformer_forward.1']
    #allocation8 [shape = 'u8[262144]{0}', space=vmem, size = 0x40000, scoped, tag = 'input window, operand 4']
    #allocation9 [shape = 'u8[262144]{0}', space=vmem, size = 0x40000, scoped, tag = 'input window, operand 5']
    #allocation10 [shape = 's32[2]{0}', space=sflag, size = 0x8, scoped, tag = 'scoped memory for simple_transformer_forward.1']
    #allocation11 [shape = 'u8[8192]{0}', space=vmem, size = 0x2000, scoped, tag = 'output window, operand 0, single buffered']
    %13 = vsyncpa [#allocation4], 0
    %14 = vsyncpa [#allocation7], 0
    %s15 = scalar_lea.sflag [#allocation7], 1
    %16 = vsyncpa %s15, 0
    %17 = vsyncpa [#allocation10], 0
    %s18 = scalar_lea.sflag [#allocation10], 1
    %19 = vsyncpa %s18, 0
    %20 = vsyncpa [#allocation5], 0
    loop: start=0, step=1, limit=4
    $region2: #{simple_transformer_forward.1} parent=1 // loop_pre_header
      _
    $region3: #{simple_transformer_forward.1} parent=1 // loop_header
      %s22 = sphi 0, %s26
      %p23 = scmp.ge.s32.totalorder %s22, 4
      %s30 = sphi 0, %s30
      %s32 = sphi 0, %s30
      %s33 = sphi 0, %s32
      %s47 = sphi 0, %s33
      %s51 = sphi 0, %s51
      %s53 = sphi 0, %s51
      %s54 = sphi 0, %s53
      %s68 = sphi 0, %s54
      %s74 = sphi 0, %s76
      %s77 = sphi 0, %s74
      %s78 = sphi 0, %s77
      %s94 = sphi 0, %s78
      %s100 = sphi 0, %s102
      %s103 = sphi 0, %s100
      %s104 = sphi 0, %s103
      %s120 = sphi 0, %s104
      %s126 = sphi 0, %s128
      %s129 = sphi 0, %s126
      %s130 = sphi 0, %s129
      %s146 = sphi 0, %s130
      %s152 = sphi 0, %s154
      %s155 = sphi 0, %s152
      %s156 = sphi 0, %s155
      %s172 = sphi 0, %s156
      %s178 = sphi 0, %s180
      %s181 = sphi 0, %s178
      %s182 = sphi 0, %s181
      %s198 = sphi 0, %s182
      %s204 = sphi 0, %s206
      %s207 = sphi 0, %s204
      %s208 = sphi 0, %s207
      %s224 = sphi 0, %s208
      %s228 = sphi 0, %s228
      %s230 = sphi 0, %s228
      %s231 = sphi 0, %s230
      %s245 = sphi 0, %s231
    $region4: #{simple_transformer_forward.1} parent=1 // loop_header_branch
      %25 = sbr.rel (%p23) target = $region8
    $region5: #{simple_transformer_forward.1} parent=1 // loop_body
      %s27 = ssub.s32 %s22, 1
      %s28 = ssub.s32 %s22, 2
      %s29 = sadd.s32 %s22, 1
      %s31 = sadd.s32 %s30, 1
      %p34 = scmp.eq.s32.totalorder %s22, 1
      %p35 = scmp.ne.s32.totalorder %s30, %s32
      %p36 = scmp.eq.s32.totalorder %s22, 0
      %p37 = por %p35, %p36
      %p38 = scmp.ne.s32.totalorder %s30, %s32
      %p39 = scmp.eq.s32.totalorder %s27, 1
      %p40 = por %p38, %p39
      %p41 = scmp.ne.s32.totalorder %s32, %s33
      %p42 = scmp.eq.s32.totalorder %s27, 0
      %p43 = por %p41, %p42
      %p44 = scmp.ne.s32.totalorder %s32, %s33
      %p45 = scmp.eq.s32.totalorder %s28, 1
      %p46 = por %p44, %p45
      %p48 = scmp.ne.s32.totalorder %s33, %s47
      %p49 = scmp.eq.s32.totalorder %s28, 0
      %p50 = por %p48, %p49
      %s52 = sadd.s32 %s51, 1
      %p55 = scmp.eq.s32.totalorder %s22, 1
      %p56 = scmp.ne.s32.totalorder %s51, %s53
      %p57 = scmp.eq.s32.totalorder %s22, 0
      %p58 = por %p56, %p57
      %p59 = scmp.ne.s32.totalorder %s51, %s53
      %p60 = scmp.eq.s32.totalorder %s27, 1
      %p61 = por %p59, %p60
      %p62 = scmp.ne.s32.totalorder %s53, %s54
      %p63 = scmp.eq.s32.totalorder %s27, 0
      %p64 = por %p62, %p63
      %p65 = scmp.ne.s32.totalorder %s53, %s54
      %p66 = scmp.eq.s32.totalorder %s28, 1
      %p67 = por %p65, %p66
      %p69 = scmp.ne.s32.totalorder %s54, %s68
      %p70 = scmp.eq.s32.totalorder %s28, 0
      %p71 = por %p69, %p70
      %s72 = ssub.s32 %s22, %s29
      %p73 = scmp.eq.s32.totalorder %s72, 0
      %s75 = sadd.s32 %s74, 1
      %s76 = scalar_select %p73, %s74, %s75
      %p79 = pneg %p73
      %p80 = scmp.eq.s32.totalorder %s22, 1
      %p81 = por %p79, %p80
      %p82 = scmp.ne.s32.totalorder %s74, %s77
      %p83 = scmp.eq.s32.totalorder %s22, 0
      %p84 = por %p82, %p83
      %p85 = scmp.ne.s32.totalorder %s74, %s77
      %p86 = scmp.eq.s32.totalorder %s27, 1
      %p87 = por %p85, %p86
      %p88 = scmp.ne.s32.totalorder %s77, %s78
      %p89 = scmp.eq.s32.totalorder %s27, 0
      %p90 = por %p88, %p89
      %p91 = scmp.ne.s32.totalorder %s77, %s78
      %p92 = scmp.eq.s32.totalorder %s28, 1
      %p93 = por %p91, %p92
      %p95 = scmp.ne.s32.totalorder %s78, %s94
      %p96 = scmp.eq.s32.totalorder %s28, 0
      %p97 = por %p95, %p96
      %s98 = ssub.s32 %s22, %s29
      %p99 = scmp.eq.s32.totalorder %s98, 0
      %s101 = sadd.s32 %s100, 1
      %s102 = scalar_select %p99, %s100, %s101
      %p105 = pneg %p99
      %p106 = scmp.eq.s32.totalorder %s22, 1
      %p107 = por %p105, %p106
      %p108 = scmp.ne.s32.totalorder %s100, %s103
      %p109 = scmp.eq.s32.totalorder %s22, 0
      %p110 = por %p108, %p109
      %p111 = scmp.ne.s32.totalorder %s100, %s103
      %p112 = scmp.eq.s32.totalorder %s27, 1
      %p113 = por %p111, %p112
      %p114 = scmp.ne.s32.totalorder %s103, %s104
      %p115 = scmp.eq.s32.totalorder %s27, 0
      %p116 = por %p114, %p115
      %p117 = scmp.ne.s32.totalorder %s103, %s104
      %p118 = scmp.eq.s32.totalorder %s28, 1
      %p119 = por %p117, %p118
      %p121 = scmp.ne.s32.totalorder %s104, %s120
      %p122 = scmp.eq.s32.totalorder %s28, 0
      %p123 = por %p121, %p122
      %s124 = ssub.s32 %s22, %s29
      %p125 = scmp.eq.s32.totalorder %s124, 0
      %s127 = sadd.s32 %s126, 1
      %s128 = scalar_select %p125, %s126, %s127
      %p131 = pneg %p125
      %p132 = scmp.eq.s32.totalorder %s22, 1
      %p133 = por %p131, %p132
      %p134 = scmp.ne.s32.totalorder %s126, %s129
      %p135 = scmp.eq.s32.totalorder %s22, 0
      %p136 = por %p134, %p135
      %p137 = scmp.ne.s32.totalorder %s126, %s129
      %p138 = scmp.eq.s32.totalorder %s27, 1
      %p139 = por %p137, %p138
      %p140 = scmp.ne.s32.totalorder %s129, %s130
      %p141 = scmp.eq.s32.totalorder %s27, 0
      %p142 = por %p140, %p141
      %p143 = scmp.ne.s32.totalorder %s129, %s130
      %p144 = scmp.eq.s32.totalorder %s28, 1
      %p145 = por %p143, %p144
      %p147 = scmp.ne.s32.totalorder %s130, %s146
      %p148 = scmp.eq.s32.totalorder %s28, 0
      %p149 = por %p147, %p148
      %s150 = ssub.s32 %s22, %s29
      %p151 = scmp.eq.s32.totalorder %s150, 0
      %s153 = sadd.s32 %s152, 1
      %s154 = scalar_select %p151, %s152, %s153
      %p157 = pneg %p151
      %p158 = scmp.eq.s32.totalorder %s22, 1
      %p159 = por %p157, %p158
      %p160 = scmp.ne.s32.totalorder %s152, %s155
      %p161 = scmp.eq.s32.totalorder %s22, 0
      %p162 = por %p160, %p161
      %p163 = scmp.ne.s32.totalorder %s152, %s155
      %p164 = scmp.eq.s32.totalorder %s27, 1
      %p165 = por %p163, %p164
      %p166 = scmp.ne.s32.totalorder %s155, %s156
      %p167 = scmp.eq.s32.totalorder %s27, 0
      %p168 = por %p166, %p167
      %p169 = scmp.ne.s32.totalorder %s155, %s156
      %p170 = scmp.eq.s32.totalorder %s28, 1
      %p171 = por %p169, %p170
      %p173 = scmp.ne.s32.totalorder %s156, %s172
      %p174 = scmp.eq.s32.totalorder %s28, 0
      %p175 = por %p173, %p174
      %s176 = ssub.s32 %s22, %s29
      %p177 = scmp.eq.s32.totalorder %s176, 0
      %s179 = sadd.s32 %s178, 1
      %s180 = scalar_select %p177, %s178, %s179
      %p183 = pneg %p177
      %p184 = scmp.eq.s32.totalorder %s22, 1
      %p185 = por %p183, %p184
      %p186 = scmp.ne.s32.totalorder %s178, %s181
      %p187 = scmp.eq.s32.totalorder %s22, 0
      %p188 = por %p186, %p187
      %p189 = scmp.ne.s32.totalorder %s178, %s181
      %p190 = scmp.eq.s32.totalorder %s27, 1
      %p191 = por %p189, %p190
      %p192 = scmp.ne.s32.totalorder %s181, %s182
      %p193 = scmp.eq.s32.totalorder %s27, 0
      %p194 = por %p192, %p193
      %p195 = scmp.ne.s32.totalorder %s181, %s182
      %p196 = scmp.eq.s32.totalorder %s28, 1
      %p197 = por %p195, %p196
      %p199 = scmp.ne.s32.totalorder %s182, %s198
      %p200 = scmp.eq.s32.totalorder %s28, 0
      %p201 = por %p199, %p200
      %s202 = ssub.s32 %s22, %s29
      %p203 = scmp.eq.s32.totalorder %s202, 0
      %s205 = sadd.s32 %s204, 1
      %s206 = scalar_select %p203, %s204, %s205
      %p209 = pneg %p203
      %p210 = scmp.eq.s32.totalorder %s22, 1
      %p211 = por %p209, %p210
      %p212 = scmp.ne.s32.totalorder %s204, %s207
      %p213 = scmp.eq.s32.totalorder %s22, 0
      %p214 = por %p212, %p213
      %p215 = scmp.ne.s32.totalorder %s204, %s207
      %p216 = scmp.eq.s32.totalorder %s27, 1
      %p217 = por %p215, %p216
      %p218 = scmp.ne.s32.totalorder %s207, %s208
      %p219 = scmp.eq.s32.totalorder %s27, 0
      %p220 = por %p218, %p219
      %p221 = scmp.ne.s32.totalorder %s207, %s208
      %p222 = scmp.eq.s32.totalorder %s28, 1
      %p223 = por %p221, %p222
      %p225 = scmp.ne.s32.totalorder %s208, %s224
      %p226 = scmp.eq.s32.totalorder %s28, 0
      %p227 = por %p225, %p226
      %s229 = sadd.s32 %s228, 1
      %p232 = scmp.eq.s32.totalorder %s22, 1
      %p233 = scmp.ne.s32.totalorder %s228, %s230
      %p234 = scmp.eq.s32.totalorder %s22, 0
      %p235 = por %p233, %p234
      %p236 = scmp.ne.s32.totalorder %s228, %s230
      %p237 = scmp.eq.s32.totalorder %s27, 1
      %p238 = por %p236, %p237
      %p239 = scmp.ne.s32.totalorder %s230, %s231
      %p240 = scmp.eq.s32.totalorder %s27, 0
      %p241 = por %p239, %p240
      %p242 = scmp.ne.s32.totalorder %s230, %s231
      %p243 = scmp.eq.s32.totalorder %s28, 1
      %p244 = por %p242, %p243
      %p246 = scmp.ne.s32.totalorder %s231, %s245
      %p247 = scmp.eq.s32.totalorder %s28, 0
      %p248 = por %p246, %p247
      %p249 = scmp.le.s32.totalorder 1, %s22
      %p250 = scmp.lt.s32.totalorder %s22, 3
      %p251 = pnand %p249, %p250
      %p252 = pneg %p251
      // Predicated region
      $region9: #{simple_transformer_forward.1} parent=5 // pred_check
        _
      $region10: #{simple_transformer_forward.1} parent=5 // pred_check_branch
        %254 = sbr.rel (%p251) target = $region12
      $region11: #{simple_transformer_forward.1} parent=5 // pred_region
        %s255 = ssub.s32 %s22, 1
        // Predicated region
        $region13: #{simple_transformer_forward.1} parent=11 // pred_check
          %p256 = pneg %p43
        $region14: #{simple_transformer_forward.1} parent=11 // pred_check_branch
          %258 = sbr.rel (%p256) target = $region16
        $region15: #{simple_transformer_forward.1} parent=11 // pred_region
          %s260 = ssub.s32 256, 256
          %261 = vsyncadd [#allocation4], %s260
          %s262 = sshll.u32 [#allocation3], 4
          %s263 = int_to_ptr.vmem [resolvable:$true] %s262
          %268 = dma.hbm_to_vmem [thread:$0]  %s0, 256, %s263, [#allocation4], 128, 128, 8
        $region16: #{simple_transformer_forward.1} parent=11 // pred_fallthru
          _
        // Predicated region
        $region17: #{simple_transformer_forward.1} parent=11 // pred_check
          %p269 = pneg %p64
        $region18: #{simple_transformer_forward.1} parent=11 // pred_check_branch
          %271 = sbr.rel (%p269) target = $region20
        $region19: #{simple_transformer_forward.1} parent=11 // pred_region
          _
        $region20: #{simple_transformer_forward.1} parent=11 // pred_fallthru
          _
      $region12: #{simple_transformer_forward.1} parent=5 // pred_fallthru
        _
      %p272 = scmp.lt.s32.totalorder %s22, 2
      // Predicated region
      $region21: #{simple_transformer_forward.1} parent=5 // pred_check
        %p273 = pneg %p272
      $region22: #{simple_transformer_forward.1} parent=5 // pred_check_branch
        %275 = sbr.rel (%p273) target = $region24
      $region23: #{simple_transformer_forward.1} parent=5 // pred_region
        // Predicated region
        $region25: #{simple_transformer_forward.1} parent=23 // pred_check
          %p276 = pneg %p84
        $region26: #{simple_transformer_forward.1} parent=23 // pred_check_branch
          %278 = sbr.rel (%p276) target = $region28
        $region27: #{simple_transformer_forward.1} parent=23 // pred_region
          %p279 = scmp.lt.s32.totalorder %s22, 1
          %s280 = scalar_select %p279, %s22, 1
          %s281 = smul.addr %s280, 4
          %s282 = smul.addr %s281, 8
          %s283 = scalar_lea.vmem %s2, %s282
        $region28: #{simple_transformer_forward.1} parent=23 // pred_fallthru
          _
        // Predicated region
        $region29: #{simple_transformer_forward.1} parent=23 // pred_check
          %p284 = pneg %p110
        $region30: #{simple_transformer_forward.1} parent=23 // pred_check_branch
          %286 = sbr.rel (%p284) target = $region32
        $region31: #{simple_transformer_forward.1} parent=23 // pred_region
          %s287 = sand.u32 %s22, 1
          %s288 = scalar_lea.sflag [#allocation7], %s287
          %s289 = sand.u32 %s100, 1
          %s290 = smul.addr %s289, 32
          %s291 = scalar_lea.vmem [#allocation6], %s290
          %s293 = ssub.s32 512, 512
          %294 = vsyncadd %s288, %s293
          %s295 = smul.addr %s22, 4
          %s296 = smul.addr %s295, 128
          %s297 = scalar_lea.hbm %s3, %s296
          %s298 = sshll.u32 %s291, 4
          %s299 = int_to_ptr.vmem [resolvable:$true] %s298
          %304 = dma.hbm_to_vmem [thread:$0]  %s297, 512, %s299, %s288, 128, 128, 8
        $region32: #{simple_transformer_forward.1} parent=23 // pred_fallthru
          _
        // Predicated region
        $region33: #{simple_transformer_forward.1} parent=23 // pred_check
          %p305 = pneg %p136
        $region34: #{simple_transformer_forward.1} parent=23 // pred_check_branch
          %307 = sbr.rel (%p305) target = $region36
        $region35: #{simple_transformer_forward.1} parent=23 // pred_region
          %s308 = sand.u32 %s22, 1
          %s309 = scalar_lea.sflag [#allocation7], %s308
          %s310 = sand.u32 %s126, 1
          %s311 = smul.addr %s310, 256
          %s312 = scalar_lea.vmem [#allocation8], %s311
          %s314 = ssub.s32 4096, 4096
          %315 = vsyncadd %s309, %s314
          %s316 = smul.addr %s22, 64
          %s317 = smul.addr %s316, 64
          %s318 = scalar_lea.hbm %s4, %s317
          %s319 = sshll.u32 %s312, 4
          %s320 = int_to_ptr.vmem [resolvable:$true] %s319
          %325 = dma.hbm_to_vmem [thread:$0]  %s318, 4096, %s320, %s309, 1024, 1024, 64
        $region36: #{simple_transformer_forward.1} parent=23 // pred_fallthru
          _
        // Predicated region
        $region37: #{simple_transformer_forward.1} parent=23 // pred_check
          %p326 = pneg %p162
        $region38: #{simple_transformer_forward.1} parent=23 // pred_check_branch
          %328 = sbr.rel (%p326) target = $region40
        $region39: #{simple_transformer_forward.1} parent=23 // pred_region
          %s329 = sand.u32 %s152, 1
          %s330 = scalar_lea.sflag [#allocation10], %s329
          %s331 = sand.u32 %s152, 1
          %s332 = smul.addr %s331, 256
          %s333 = scalar_lea.vmem [#allocation9], %s332
          %s335 = ssub.s32 4096, 4096
          %336 = vsyncadd %s330, %s335
          %s337 = smul.addr %s22, 64
          %s338 = smul.addr %s337, 64
          %s339 = scalar_lea.hbm %s5, %s338
          %s340 = sshll.u32 %s333, 4
          %s341 = int_to_ptr.vmem [resolvable:$true] %s340
          %346 = dma.hbm_to_vmem [thread:$0]  %s339, 4096, %s341, %s330, 1024, 1024, 64
        $region40: #{simple_transformer_forward.1} parent=23 // pred_fallthru
          _
        // Predicated region
        $region41: #{simple_transformer_forward.1} parent=23 // pred_check
          %p347 = pneg %p188
        $region42: #{simple_transformer_forward.1} parent=23 // pred_check_branch
          %349 = sbr.rel (%p347) target = $region44
        $region43: #{simple_transformer_forward.1} parent=23 // pred_region
          %p350 = scmp.lt.s32.totalorder %s22, 1
          %s351 = scalar_select %p350, %s22, 1
          %s352 = smul.addr %s351, 16
          %s353 = scalar_lea.vmem %s6, %s352
        $region44: #{simple_transformer_forward.1} parent=23 // pred_fallthru
          _
        // Predicated region
        $region45: #{simple_transformer_forward.1} parent=23 // pred_check
          %p354 = pneg %p214
        $region46: #{simple_transformer_forward.1} parent=23 // pred_check_branch
          %356 = sbr.rel (%p354) target = $region48
        $region47: #{simple_transformer_forward.1} parent=23 // pred_region
          %p357 = scmp.lt.s32.totalorder %s22, 1
          %s358 = scalar_select %p357, %s22, 1
          %s359 = smul.addr %s358, 2
          %s360 = smul.addr %s359, 8
          %s361 = scalar_lea.vmem %s7, %s360
        $region48: #{simple_transformer_forward.1} parent=23 // pred_fallthru
          _
      $region24: #{simple_transformer_forward.1} parent=5 // pred_fallthru
        _
      %p362 = scmp.le.s32.totalorder 1, %s22
      %p363 = scmp.lt.s32.totalorder %s22, 3
      %p364 = pnand %p362, %p363
      %p365 = pneg %p364
      // Predicated region
      $region49: #{simple_transformer_forward.1} parent=5 // pred_check
        _
      $region50: #{simple_transformer_forward.1} parent=5 // pred_check_branch
        %367 = sbr.rel (%p364) target = $region52
      $region51: #{simple_transformer_forward.1} parent=5 // pred_region
        %s368 = ssub.s32 %s22, 1
        // Predicated region
        $region53: #{simple_transformer_forward.1} parent=51 // pred_check
          %p369 = pneg %p43
        $region54: #{simple_transformer_forward.1} parent=51 // pred_check_branch
          %371 = sbr.rel (%p369) target = $region56
        $region55: #{simple_transformer_forward.1} parent=51 // pred_region
          %372 = dma.done [#allocation4], 256
        $region56: #{simple_transformer_forward.1} parent=51 // pred_fallthru
          _
        %s373 = sand.u32 %s27, 1
        %s374 = scalar_lea.sflag [#allocation7], %s373
        %s375 = sand.u32 %s103, 1
        %s376 = smul.addr %s375, 32
        %s377 = scalar_lea.vmem [#allocation6], %s376
        // Predicated region
        $region57: #{simple_transformer_forward.1} parent=51 // pred_check
          %p378 = pneg %p116
        $region58: #{simple_transformer_forward.1} parent=51 // pred_check_branch
          %380 = sbr.rel (%p378) target = $region60
        $region59: #{simple_transformer_forward.1} parent=51 // pred_region
          %381 = dma.done %s374, 512
        $region60: #{simple_transformer_forward.1} parent=51 // pred_fallthru
          _
        %s382 = sand.u32 %s27, 1
        %s383 = scalar_lea.sflag [#allocation7], %s382
        %s384 = sand.u32 %s129, 1
        %s385 = smul.addr %s384, 256
        %s386 = scalar_lea.vmem [#allocation8], %s385
        // Predicated region
        $region61: #{simple_transformer_forward.1} parent=51 // pred_check
          %p387 = pneg %p142
        $region62: #{simple_transformer_forward.1} parent=51 // pred_check_branch
          %389 = sbr.rel (%p387) target = $region64
        $region63: #{simple_transformer_forward.1} parent=51 // pred_region
          %390 = dma.done %s383, 4096
        $region64: #{simple_transformer_forward.1} parent=51 // pred_fallthru
          _
        %s391 = sand.u32 %s155, 1
        %s392 = scalar_lea.sflag [#allocation10], %s391
        %s393 = sand.u32 %s155, 1
        %s394 = smul.addr %s393, 256
        %s395 = scalar_lea.vmem [#allocation9], %s394
        // Predicated region
        $region65: #{simple_transformer_forward.1} parent=51 // pred_check
          %p396 = pneg %p168
        $region66: #{simple_transformer_forward.1} parent=51 // pred_check_branch
          %398 = sbr.rel (%p396) target = $region68
        $region67: #{simple_transformer_forward.1} parent=51 // pred_region
          %399 = dma.done %s392, 4096
        $region68: #{simple_transformer_forward.1} parent=51 // pred_fallthru
          _
        %p400 = pneg %p43
        %p401 = pneg %p40
        %p402 = pneg %p64
        %p403 = pneg %p61
        %p404 = scmp.lt.s32.totalorder %s27, 1
        %s405 = scalar_select %p404, %s27, 1
        %s406 = smul.addr %s405, 4
        %s407 = smul.addr %s406, 8
        %s408 = scalar_lea.vmem %s2, %s407
        %p409 = pneg %p90
        %p410 = pneg %p87
        %s411 = sand.u32 %s27, 1
        %s412 = scalar_lea.sflag [#allocation7], %s411
        %s413 = sand.u32 %s103, 1
        %s414 = smul.addr %s413, 32
        %s415 = scalar_lea.vmem [#allocation6], %s414
        %p416 = pneg %p116
        %p417 = pneg %p113
        %s418 = sand.u32 %s27, 1
        %s419 = scalar_lea.sflag [#allocation7], %s418
        %s420 = sand.u32 %s129, 1
        %s421 = smul.addr %s420, 256
        %s422 = scalar_lea.vmem [#allocation8], %s421
        %p423 = pneg %p142
        %p424 = pneg %p139
        %s425 = sand.u32 %s155, 1
        %s426 = scalar_lea.sflag [#allocation10], %s425
        %s427 = sand.u32 %s155, 1
        %s428 = smul.addr %s427, 256
        %s429 = scalar_lea.vmem [#allocation9], %s428
        %p430 = pneg %p168
        %p431 = pneg %p165
        %p432 = scmp.lt.s32.totalorder %s27, 1
        %s433 = scalar_select %p432, %s27, 1
        %s434 = smul.addr %s433, 16
        %s435 = scalar_lea.vmem %s6, %s434
        %p436 = pneg %p194
        %p437 = pneg %p191
        %p438 = scmp.lt.s32.totalorder %s27, 1
        %s439 = scalar_select %p438, %s27, 1
        %s440 = smul.addr %s439, 2
        %s441 = smul.addr %s440, 8
        %s442 = scalar_lea.vmem %s7, %s441
        %p443 = pneg %p220
        %p444 = pneg %p217
        %p445 = pneg %p241
        %p446 = pneg %p238
        %p447 = scmp.lt.s32.totalorder %s27, 1
        %s448 = scalar_select %p447, %s27, 1
        %s449 = smul.addr %s448, 4
        %s450 = smul.addr %s449, 8
        %s451 = scalar_lea.vmem %s2, %s450
        %p452 = scmp.lt.s32.totalorder %s27, 1
        %s453 = scalar_select %p452, %s27, 1
        %s454 = smul.addr %s453, 16
        %s455 = scalar_lea.vmem %s6, %s454
        %p456 = scmp.lt.s32.totalorder %s27, 1
        %s457 = scalar_select %p456, %s27, 1
        %s458 = smul.addr %s457, 2
        %s459 = smul.addr %s458, 8
        %s460 = scalar_lea.vmem %s7, %s459
        %p462 = scmp.eq.s32.totalorder %s27, 0
        // Predicated region
        $region69: #{simple_transformer_forward.1} parent=51 // pred_check
          %p463 = pneg %p462
        $region70: #{simple_transformer_forward.1} parent=51 // pred_check_branch
          %465 = sbr.rel (%p463) target = $region72
        $region71: #{simple_transformer_forward.1} parent=51 // pred_region
          %v466 = vld [vmem:[#allocation3] sm:$0xff]
          %v467 = vld [vmem:[#allocation3 + $0x8] sm:$0xff]
          %vm468 = vcmask 261120
          %469 = vst.msk [vmem:[#allocation2] sm:$0xff] %vm468, %v466
          %470 = vst.msk [vmem:[#allocation2 + $0x8] sm:$0xff] %vm468, %v467
        $region72: #{simple_transformer_forward.1} parent=51 // pred_fallthru
          _
        %v471 = vld [vmem:[#allocation2] sm:$0xff]
        %v472 = vld [vmem:[#allocation2 + $0x8] sm:$0xff]
        %v473 = vld [vmem:[%s1] sm:$0xff]
        %v474 = vld [vmem:[%s1 + $0x8] sm:$0xff]
        %v475 = vld [vmem:[%s460] sm:$0xff]
        %v476 = vld [vmem:[%s460 + $0x8] sm:$0x1]
        %v477 = vld [vmem:[%s451] sm:$0xff]
        %v478 = vld [vmem:[%s451 + $0x8] sm:$0xff]
        %v479 = vld [vmem:[%s451 + $0x10] sm:$0xff]
        %v480 = vld [vmem:[%s451 + $0x18] sm:$0xff]
        %vm481 = vcmask 261120
        %v483 = vsel %vm481, %v471, 0
        %v486 = vsel %vm481, %v472, 0
        %488 = vmatprep.subr.mxu0 0.0
        %489 = vmatpush1.msra.mxu0 %v477
        %490 = vmatprep.subr.mxu0 0.0
        %491 = vmatpush1.msra.mxu0 %v478
        %492 = vmatprep.subr.mxu0 0.0
        %493 = vmatpush1.msra.mxu0 %v479
        %494 = vmatprep.subr.mxu0 0.0
        %495 = vmatpush1.msra.mxu0 %v480
        %496 = vmatprep.subr.mxu0 0.0
        %497 = vmatpush1.msra.mxu0 0.0
        %498 = vmatprep.subr.mxu0 0.0
        %499 = vmatpush1.msra.mxu0 0.0
        %500 = vmatprep.subr.mxu0 0.0
        %501 = vmatpush1.msra.mxu0 0.0
        %502 = vmatprep.subr.mxu0 0.0
        %503 = vmatpush1.msra.mxu0 0.0
        %504 = vmatprep.subr.mxu0 0.0
        %505 = vmatpush1.msra.mxu0 0.0
        %506 = vmatprep.subr.mxu0 0.0
        %507 = vmatpush1.msra.mxu0 0.0
        %508 = vmatprep.subr.mxu0 0.0
        %509 = vmatpush1.msra.mxu0 0.0
        %510 = vmatprep.subr.mxu0 0.0
        %511 = vmatpush1.msra.mxu0 0.0
        %512 = vmatprep.subr.mxu0 0.0
        %513 = vmatpush1.msra.mxu0 0.0
        %514 = vmatprep.subr.mxu0 0.0
        %515 = vmatpush1.msra.mxu0 0.0
        %516 = vmatprep.subr.mxu0 0.0
        %517 = vmatpush1.msra.mxu0 0.0
        %518 = vmatprep.subr.mxu0 0.0
        %519 = vmatpush1.msra.mxu0 0.0
        %520 = vmatprep.subr.mxu0 0.0
        %521 = vmatpush1.msra.mxu0 0.0
        %522 = vmatprep.subr.mxu0 0.0
        %523 = vmatpush1.msra.mxu0 0.0
        %524 = vmatprep.subr.mxu0 0.0
        %525 = vmatpush1.msra.mxu0 0.0
        %526 = vmatprep.subr.mxu0 0.0
        %527 = vmatpush1.msra.mxu0 0.0
        %528 = vmatprep.subr.mxu0 0.0
        %529 = vmatpush1.msra.mxu0 0.0
        %530 = vmatprep.subr.mxu0 0.0
        %531 = vmatpush1.msra.mxu0 0.0
        %532 = vmatprep.subr.mxu0 0.0
        %533 = vmatpush1.msra.mxu0 0.0
        %534 = vmatprep.subr.mxu0 0.0
        %535 = vmatpush1.msra.mxu0 0.0
        %536 = vmatprep.subr.mxu0 0.0
        %537 = vmatpush1.msra.mxu0 0.0
        %538 = vmatprep.subr.mxu0 0.0
        %539 = vmatpush1.msra.mxu0 0.0
        %540 = vmatprep.subr.mxu0 0.0
        %541 = vmatpush1.msra.mxu0 0.0
        %542 = vmatprep.subr.mxu0 0.0
        %543 = vmatpush1.msra.mxu0 0.0
        %544 = vmatprep.subr.mxu0 0.0
        %545 = vmatpush1.msra.mxu0 0.0
        %546 = vmatprep.subr.mxu0 0.0
        %547 = vmatpush1.msra.mxu0 0.0
        %548 = vmatprep.subr.mxu0 0.0
        %549 = vmatpush1.msra.mxu0 0.0
        %550 = vmatprep.subr.mxu0 0.0
        %551 = vmatpush1.msra.mxu0 0.0
        %552 = vmatprep.mubr.f32.mxu0 0.0
        %553 = vmatmul.mubr.f32.gmra.mrb[0].mxu0 %v483
        %v554 = vpop.f32.mrb[0].mxu0
        %v555 = vadd.f32 0.0, %v554
        %v556 = vpop.f32.mrb[0].mxu0
        %557 = vmatprep.mubr.f32.mxu0 0.0
        %558 = vmatmul.mubr.f32.gmra.mrb[0].mxu0 %v486
        %v559 = vpop.f32.mrb[0].mxu0
        %v560 = vadd.f32 0.0, %v559
        %v561 = vpop.f32.mrb[0].mxu0
        %562 = vdwg.mxu0
        %v563 = vlaneseq
        %v564 = vshrl.u32 %v563, 7
        %v565 = vsub.s32 0, %v564
        %v566 = vrot.slane %v475, %v565
        %v567 = vadd.f32 %v555, %v566
        %v568 = vadd.f32 %v560, %v566
        %571 = vrot.lane.b32.xlu0 %v555, 96
        %v572 = vpop.permute.xlu0 %571
        %573 = vrot.lane.b32.xlu0 %v560, 96
        %v574 = vpop.permute.xlu0 %573
        %vm575 = vcmask 130048
        %v577 = vsel %vm575, %v567, 0
        %v580 = vsel %vm575, %v568, 0
        %v582 = vsel %vm575, %v572, 0
        %v584 = vsel %vm575, %v574, 0
        %586 = vmatprep.subr.mxu0 0.0
        %587 = vmatpush1.xpose.msra.mxu0 %v582
        %588 = vmatprep.subr.mxu0 0.0
        %589 = vmatpush1.xpose.msra.mxu0 %v584
        %590 = vmatprep.subr.mxu0 0.0
        %591 = vmatpush1.xpose.msra.mxu0 0.0
        %592 = vmatprep.subr.mxu0 0.0
        %593 = vmatpush1.xpose.msra.mxu0 0.0
        %594 = vmatprep.subr.mxu0 0.0
        %595 = vmatpush1.xpose.msra.mxu0 0.0
        %596 = vmatprep.subr.mxu0 0.0
        %597 = vmatpush1.xpose.msra.mxu0 0.0
        %598 = vmatprep.subr.mxu0 0.0
        %599 = vmatpush1.xpose.msra.mxu0 0.0
        %600 = vmatprep.subr.mxu0 0.0
        %601 = vmatpush1.xpose.msra.mxu0 0.0
        %602 = vmatprep.subr.mxu0 0.0
        %603 = vmatpush1.xpose.msra.mxu0 0.0
        %604 = vmatprep.subr.mxu0 0.0
        %605 = vmatpush1.xpose.msra.mxu0 0.0
        %606 = vmatprep.subr.mxu0 0.0
        %607 = vmatpush1.xpose.msra.mxu0 0.0
        %608 = vmatprep.subr.mxu0 0.0
        %609 = vmatpush1.xpose.msra.mxu0 0.0
        %610 = vmatprep.subr.mxu0 0.0
        %611 = vmatpush1.xpose.msra.mxu0 0.0
        %612 = vmatprep.subr.mxu0 0.0
        %613 = vmatpush1.xpose.msra.mxu0 0.0
        %614 = vmatprep.subr.mxu0 0.0
        %615 = vmatpush1.xpose.msra.mxu0 0.0
        %616 = vmatprep.subr.mxu0 0.0
        %617 = vmatpush1.xpose.msra.mxu0 0.0
        %618 = vmatprep.subr.mxu0 0.0
        %619 = vmatpush1.xpose.msra.mxu0 0.0
        %620 = vmatprep.subr.mxu0 0.0
        %621 = vmatpush1.xpose.msra.mxu0 0.0
        %622 = vmatprep.subr.mxu0 0.0
        %623 = vmatpush1.xpose.msra.mxu0 0.0
        %624 = vmatprep.subr.mxu0 0.0
        %625 = vmatpush1.xpose.msra.mxu0 0.0
        %626 = vmatprep.subr.mxu0 0.0
        %627 = vmatpush1.xpose.msra.mxu0 0.0
        %628 = vmatprep.subr.mxu0 0.0
        %629 = vmatpush1.xpose.msra.mxu0 0.0
        %630 = vmatprep.subr.mxu0 0.0
        %631 = vmatpush1.xpose.msra.mxu0 0.0
        %632 = vmatprep.subr.mxu0 0.0
        %633 = vmatpush1.xpose.msra.mxu0 0.0
        %634 = vmatprep.subr.mxu0 0.0
        %635 = vmatpush1.xpose.msra.mxu0 0.0
        %636 = vmatprep.subr.mxu0 0.0
        %637 = vmatpush1.xpose.msra.mxu0 0.0
        %638 = vmatprep.subr.mxu0 0.0
        %639 = vmatpush1.xpose.msra.mxu0 0.0
        %640 = vmatprep.subr.mxu0 0.0
        %641 = vmatpush1.xpose.msra.mxu0 0.0
        %642 = vmatprep.subr.mxu0 0.0
        %643 = vmatpush1.xpose.msra.mxu0 0.0
        %644 = vmatprep.subr.mxu0 0.0
        %645 = vmatpush1.xpose.msra.mxu0 0.0
        %646 = vmatprep.subr.mxu0 0.0
        %647 = vmatpush1.xpose.msra.mxu0 0.0
        %648 = vmatprep.subr.mxu0 0.0
        %649 = vmatpush1.xpose.msra.mxu0 0.0
        %650 = vmatprep.mubr.f32.mxu0 0.0
        %651 = vmatmul.mubr.f32.gmra.mrb[0].mxu0 %v577
        %v652 = vpop.f32.mrb[0].mxu0
        %v653 = vadd.f32 0.0, %v652
        %v654 = vpop.f32.mrb[0].mxu0
        %655 = vmatprep.mubr.f32.mxu0 0.0
        %656 = vmatmul.mubr.f32.gmra.mrb[0].mxu0 %v580
        %v657 = vpop.f32.mrb[0].mxu0
        %v658 = vadd.f32 0.0, %v657
        %v659 = vpop.f32.mrb[0].mxu0
        %660 = vdwg.mxu0
        %v661 = vmul.f32 %v653, 0.25
        %v662 = vmul.f32 %v658, 0.25
        %v663 = vadd.f32 %v661, %v473
        %v664 = vadd.f32 %v662, %v474
        %v665 = vsel %vm575, %v663, -inf
        %666 = vmax.xlane.f32.xlu0 %v665
        %v667 = vpop.xlane.xlu0 %666
        %v668 = vsel %vm575, %v664, -inf
        %669 = vmax.xlane.f32.xlu0 %v668
        %v670 = vpop.xlane.xlu0 %669
        %v671 = vsub.f32 %v663, %v667
        %v672 = vsub.f32 %v664, %v670
        %v673 = vmul.f32 %v671, 1.442695
        %v674 = vpow.pop %v673
        %v675 = vmul.f32 %v672, 1.442695
        %v676 = vpow.pop %v675
        %v677 = vsel %vm575, %v674, 0.0
        %678 = vadd.xlane.f32.xlu0 %v677
        %v679 = vpop.xlane.xlu0 %678
        %v680 = vsel %vm575, %v676, 0.0
        %681 = vadd.xlane.f32.xlu0 %v680
        %v682 = vpop.xlane.xlu0 %681
        %v683 = vrcp.pop %v679
        %v684 = vrcp.pop %v682
        %v685 = vmul.f32 %v674, %v683
        %v686 = vmul.f32 %v676, %v684
        %687 = vrot.lane.b32.xlu0 %v555, 64
        %v688 = vpop.permute.xlu0 %687
        %689 = vrot.lane.b32.xlu0 %v560, 64
        %v690 = vpop.permute.xlu0 %689
        %v694 = vsel %vm575, %v685, 0
        %v697 = vsel %vm575, %v686, 0
        %699 = vmatprep.subr.mxu0 0.0
        %700 = vmatpush1.msra.mxu0 %v688
        %701 = vmatprep.subr.mxu0 0.0
        %702 = vmatpush1.msra.mxu0 %v690
        %703 = vmatprep.subr.mxu0 0.0
        %704 = vmatpush1.msra.mxu0 0.0
        %705 = vmatprep.subr.mxu0 0.0
        %706 = vmatpush1.msra.mxu0 0.0
        %707 = vmatprep.subr.mxu0 0.0
        %708 = vmatpush1.msra.mxu0 0.0
        %709 = vmatprep.subr.mxu0 0.0
        %710 = vmatpush1.msra.mxu0 0.0
        %711 = vmatprep.subr.mxu0 0.0
        %712 = vmatpush1.msra.mxu0 0.0
        %713 = vmatprep.subr.mxu0 0.0
        %714 = vmatpush1.msra.mxu0 0.0
        %715 = vmatprep.subr.mxu0 0.0
        %716 = vmatpush1.msra.mxu0 0.0
        %717 = vmatprep.subr.mxu0 0.0
        %718 = vmatpush1.msra.mxu0 0.0
        %719 = vmatprep.subr.mxu0 0.0
        %720 = vmatpush1.msra.mxu0 0.0
        %721 = vmatprep.subr.mxu0 0.0
        %722 = vmatpush1.msra.mxu0 0.0
        %723 = vmatprep.subr.mxu0 0.0
        %724 = vmatpush1.msra.mxu0 0.0
        %725 = vmatprep.subr.mxu0 0.0
        %726 = vmatpush1.msra.mxu0 0.0
        %727 = vmatprep.subr.mxu0 0.0
        %728 = vmatpush1.msra.mxu0 0.0
        %729 = vmatprep.subr.mxu0 0.0
        %730 = vmatpush1.msra.mxu0 0.0
        %731 = vmatprep.subr.mxu0 0.0
        %732 = vmatpush1.msra.mxu0 0.0
        %733 = vmatprep.subr.mxu0 0.0
        %734 = vmatpush1.msra.mxu0 0.0
        %735 = vmatprep.subr.mxu0 0.0
        %736 = vmatpush1.msra.mxu0 0.0
        %737 = vmatprep.subr.mxu0 0.0
        %738 = vmatpush1.msra.mxu0 0.0
        %739 = vmatprep.subr.mxu0 0.0
        %740 = vmatpush1.msra.mxu0 0.0
        %741 = vmatprep.subr.mxu0 0.0
        %742 = vmatpush1.msra.mxu0 0.0
        %743 = vmatprep.subr.mxu0 0.0
        %744 = vmatpush1.msra.mxu0 0.0
        %745 = vmatprep.subr.mxu0 0.0
        %746 = vmatpush1.msra.mxu0 0.0
        %747 = vmatprep.subr.mxu0 0.0
        %748 = vmatpush1.msra.mxu0 0.0
        %749 = vmatprep.subr.mxu0 0.0
        %750 = vmatpush1.msra.mxu0 0.0
        %751 = vmatprep.subr.mxu0 0.0
        %752 = vmatpush1.msra.mxu0 0.0
        %753 = vmatprep.subr.mxu0 0.0
        %754 = vmatpush1.msra.mxu0 0.0
        %755 = vmatprep.subr.mxu0 0.0
        %756 = vmatpush1.msra.mxu0 0.0
        %757 = vmatprep.subr.mxu0 0.0
        %758 = vmatpush1.msra.mxu0 0.0
        %759 = vmatprep.subr.mxu0 0.0
        %760 = vmatpush1.msra.mxu0 0.0
        %761 = vmatprep.subr.mxu0 0.0
        %762 = vmatpush1.msra.mxu0 0.0
        %763 = vmatprep.mubr.f32.mxu0 0.0
        %764 = vmatmul.mubr.f32.gmra.mrb[0].mxu0 %v694
        %v765 = vpop.f32.mrb[0].mxu0
        %v766 = vadd.f32 0.0, %v765
        %v767 = vpop.f32.mrb[0].mxu0
        %768 = vmatprep.mubr.f32.mxu0 0.0
        %769 = vmatmul.mubr.f32.gmra.mrb[0].mxu0 %v697
        %v770 = vpop.f32.mrb[0].mxu0
        %v771 = vadd.f32 0.0, %v770
        %v772 = vpop.f32.mrb[0].mxu0
        %773 = vdwg.mxu0
        %774 = vrot.lane.b32.xlu0 %v567, 112
        %v775 = vpop.permute.xlu0 %774
        %776 = vrot.lane.b32.xlu0 %v568, 112
        %v777 = vpop.permute.xlu0 %776
        %778 = vrot.lane.b32.xlu0 %v555, 80
        %v779 = vpop.permute.xlu0 %778
        %780 = vrot.lane.b32.xlu0 %v560, 80
        %v781 = vpop.permute.xlu0 %780
        %v782 = vsel %vm575, %v775, 0
        %v784 = vsel %vm575, %v777, 0
        %v786 = vsel %vm575, %v779, 0
        %v788 = vsel %vm575, %v781, 0
        %790 = vmatprep.subr.mxu0 0.0
        %791 = vmatpush1.xpose.msra.mxu0 %v786
        %792 = vmatprep.subr.mxu0 0.0
        %793 = vmatpush1.xpose.msra.mxu0 %v788
        %794 = vmatprep.subr.mxu0 0.0
        %795 = vmatpush1.xpose.msra.mxu0 0.0
        %796 = vmatprep.subr.mxu0 0.0
        %797 = vmatpush1.xpose.msra.mxu0 0.0
        %798 = vmatprep.subr.mxu0 0.0
        %799 = vmatpush1.xpose.msra.mxu0 0.0
        %800 = vmatprep.subr.mxu0 0.0
        %801 = vmatpush1.xpose.msra.mxu0 0.0
        %802 = vmatprep.subr.mxu0 0.0
        %803 = vmatpush1.xpose.msra.mxu0 0.0
        %804 = vmatprep.subr.mxu0 0.0
        %805 = vmatpush1.xpose.msra.mxu0 0.0
        %806 = vmatprep.subr.mxu0 0.0
        %807 = vmatpush1.xpose.msra.mxu0 0.0
        %808 = vmatprep.subr.mxu0 0.0
        %809 = vmatpush1.xpose.msra.mxu0 0.0
        %810 = vmatprep.subr.mxu0 0.0
        %811 = vmatpush1.xpose.msra.mxu0 0.0
        %812 = vmatprep.subr.mxu0 0.0
        %813 = vmatpush1.xpose.msra.mxu0 0.0
        %814 = vmatprep.subr.mxu0 0.0
        %815 = vmatpush1.xpose.msra.mxu0 0.0
        %816 = vmatprep.subr.mxu0 0.0
        %817 = vmatpush1.xpose.msra.mxu0 0.0
        %818 = vmatprep.subr.mxu0 0.0
        %819 = vmatpush1.xpose.msra.mxu0 0.0
        %820 = vmatprep.subr.mxu0 0.0
        %821 = vmatpush1.xpose.msra.mxu0 0.0
        %822 = vmatprep.subr.mxu0 0.0
        %823 = vmatpush1.xpose.msra.mxu0 0.0
        %824 = vmatprep.subr.mxu0 0.0
        %825 = vmatpush1.xpose.msra.mxu0 0.0
        %826 = vmatprep.subr.mxu0 0.0
        %827 = vmatpush1.xpose.msra.mxu0 0.0
        %828 = vmatprep.subr.mxu0 0.0
        %829 = vmatpush1.xpose.msra.mxu0 0.0
        %830 = vmatprep.subr.mxu0 0.0
        %831 = vmatpush1.xpose.msra.mxu0 0.0
        %832 = vmatprep.subr.mxu0 0.0
        %833 = vmatpush1.xpose.msra.mxu0 0.0
        %834 = vmatprep.subr.mxu0 0.0
        %835 = vmatpush1.xpose.msra.mxu0 0.0
        %836 = vmatprep.subr.mxu0 0.0
        %837 = vmatpush1.xpose.msra.mxu0 0.0
        %838 = vmatprep.subr.mxu0 0.0
        %839 = vmatpush1.xpose.msra.mxu0 0.0
        %840 = vmatprep.subr.mxu0 0.0
        %841 = vmatpush1.xpose.msra.mxu0 0.0
        %842 = vmatprep.subr.mxu0 0.0
        %843 = vmatpush1.xpose.msra.mxu0 0.0
        %844 = vmatprep.subr.mxu0 0.0
        %845 = vmatpush1.xpose.msra.mxu0 0.0
        %846 = vmatprep.subr.mxu0 0.0
        %847 = vmatpush1.xpose.msra.mxu0 0.0
        %848 = vmatprep.subr.mxu0 0.0
        %849 = vmatpush1.xpose.msra.mxu0 0.0
        %850 = vmatprep.subr.mxu0 0.0
        %851 = vmatpush1.xpose.msra.mxu0 0.0
        %852 = vmatprep.subr.mxu0 0.0
        %853 = vmatpush1.xpose.msra.mxu0 0.0
        %854 = vmatprep.mubr.f32.mxu0 0.0
        %855 = vmatmul.mubr.f32.gmra.mrb[0].mxu0 %v782
        %v856 = vpop.f32.mrb[0].mxu0
        %v857 = vadd.f32 0.0, %v856
        %v858 = vpop.f32.mrb[0].mxu0
        %859 = vmatprep.mubr.f32.mxu0 0.0
        %860 = vmatmul.mubr.f32.gmra.mrb[0].mxu0 %v784
        %v861 = vpop.f32.mrb[0].mxu0
        %v862 = vadd.f32 0.0, %v861
        %v863 = vpop.f32.mrb[0].mxu0
        %864 = vdwg.mxu0
        %v865 = vmul.f32 %v857, 0.25
        %v866 = vmul.f32 %v862, 0.25
        %v867 = vadd.f32 %v865, %v473
        %v868 = vadd.f32 %v866, %v474
        %v869 = vsel %vm575, %v867, -inf
        %870 = vmax.xlane.f32.xlu0 %v869
        %v871 = vpop.xlane.xlu0 %870
        %v872 = vsel %vm575, %v868, -inf
        %873 = vmax.xlane.f32.xlu0 %v872
        %v874 = vpop.xlane.xlu0 %873
        %v875 = vsub.f32 %v867, %v871
        %v876 = vsub.f32 %v868, %v874
        %v877 = vmul.f32 %v875, 1.442695
        %v878 = vpow.pop %v877
        %v879 = vmul.f32 %v876, 1.442695
        %v880 = vpow.pop %v879
        %v881 = vsel %vm575, %v878, 0.0
        %882 = vadd.xlane.f32.xlu0 %v881
        %v883 = vpop.xlane.xlu0 %882
        %v884 = vsel %vm575, %v880, 0.0
        %885 = vadd.xlane.f32.xlu0 %v884
        %v886 = vpop.xlane.xlu0 %885
        %v887 = vrcp.pop %v883
        %v888 = vrcp.pop %v886
        %v889 = vmul.f32 %v878, %v887
        %v890 = vmul.f32 %v880, %v888
        %891 = vrot.lane.b32.xlu0 %v555, 48
        %v892 = vpop.permute.xlu0 %891
        %893 = vrot.lane.b32.xlu0 %v560, 48
        %v894 = vpop.permute.xlu0 %893
        %v898 = vsel %vm575, %v889, 0
        %v901 = vsel %vm575, %v890, 0
        %903 = vmatprep.subr.mxu0 0.0
        %904 = vmatpush1.msra.mxu0 %v892
        %905 = vmatprep.subr.mxu0 0.0
        %906 = vmatpush1.msra.mxu0 %v894
        %907 = vmatprep.subr.mxu0 0.0
        %908 = vmatpush1.msra.mxu0 0.0
        %909 = vmatprep.subr.mxu0 0.0
        %910 = vmatpush1.msra.mxu0 0.0
        %911 = vmatprep.subr.mxu0 0.0
        %912 = vmatpush1.msra.mxu0 0.0
        %913 = vmatprep.subr.mxu0 0.0
        %914 = vmatpush1.msra.mxu0 0.0
        %915 = vmatprep.subr.mxu0 0.0
        %916 = vmatpush1.msra.mxu0 0.0
        %917 = vmatprep.subr.mxu0 0.0
        %918 = vmatpush1.msra.mxu0 0.0
        %919 = vmatprep.subr.mxu0 0.0
        %920 = vmatpush1.msra.mxu0 0.0
        %921 = vmatprep.subr.mxu0 0.0
        %922 = vmatpush1.msra.mxu0 0.0
        %923 = vmatprep.subr.mxu0 0.0
        %924 = vmatpush1.msra.mxu0 0.0
        %925 = vmatprep.subr.mxu0 0.0
        %926 = vmatpush1.msra.mxu0 0.0
        %927 = vmatprep.subr.mxu0 0.0
        %928 = vmatpush1.msra.mxu0 0.0
        %929 = vmatprep.subr.mxu0 0.0
        %930 = vmatpush1.msra.mxu0 0.0
        %931 = vmatprep.subr.mxu0 0.0
        %932 = vmatpush1.msra.mxu0 0.0
        %933 = vmatprep.subr.mxu0 0.0
        %934 = vmatpush1.msra.mxu0 0.0
        %935 = vmatprep.subr.mxu0 0.0
        %936 = vmatpush1.msra.mxu0 0.0
        %937 = vmatprep.subr.mxu0 0.0
        %938 = vmatpush1.msra.mxu0 0.0
        %939 = vmatprep.subr.mxu0 0.0
        %940 = vmatpush1.msra.mxu0 0.0
        %941 = vmatprep.subr.mxu0 0.0
        %942 = vmatpush1.msra.mxu0 0.0
        %943 = vmatprep.subr.mxu0 0.0
        %944 = vmatpush1.msra.mxu0 0.0
        %945 = vmatprep.subr.mxu0 0.0
        %946 = vmatpush1.msra.mxu0 0.0
        %947 = vmatprep.subr.mxu0 0.0
        %948 = vmatpush1.msra.mxu0 0.0
        %949 = vmatprep.subr.mxu0 0.0
        %950 = vmatpush1.msra.mxu0 0.0
        %951 = vmatprep.subr.mxu0 0.0
        %952 = vmatpush1.msra.mxu0 0.0
        %953 = vmatprep.subr.mxu0 0.0
        %954 = vmatpush1.msra.mxu0 0.0
        %955 = vmatprep.subr.mxu0 0.0
        %956 = vmatpush1.msra.mxu0 0.0
        %957 = vmatprep.subr.mxu0 0.0
        %958 = vmatpush1.msra.mxu0 0.0
        %959 = vmatprep.subr.mxu0 0.0
        %960 = vmatpush1.msra.mxu0 0.0
        %961 = vmatprep.subr.mxu0 0.0
        %962 = vmatpush1.msra.mxu0 0.0
        %963 = vmatprep.subr.mxu0 0.0
        %964 = vmatpush1.msra.mxu0 0.0
        %965 = vmatprep.subr.mxu0 0.0
        %966 = vmatpush1.msra.mxu0 0.0
        %967 = vmatprep.mubr.f32.mxu0 0.0
        %968 = vmatmul.mubr.f32.gmra.mrb[0].mxu0 %v898
        %v969 = vpop.f32.mrb[0].mxu0
        %v970 = vadd.f32 0.0, %v969
        %v971 = vpop.f32.mrb[0].mxu0
        %972 = vmatprep.mubr.f32.mxu0 0.0
        %973 = vmatmul.mubr.f32.gmra.mrb[0].mxu0 %v901
        %v974 = vpop.f32.mrb[0].mxu0
        %v975 = vadd.f32 0.0, %v974
        %v976 = vpop.f32.mrb[0].mxu0
        %977 = vdwg.mxu0
        %980 = vrot.lane.b32.xlu0 %v970, 16
        %v981 = vpop.permute.xlu0 %980
        %982 = vrot.lane.b32.xlu0 %v975, 16
        %v983 = vpop.permute.xlu0 %982
        %v986 = vsel %vm575, %v766, %v981
        %v987 = vsel %vm575, %v771, %v983
        %v988 = vlaneseq
        %v989 = vshrl.u32 %v988, 7
        %v990 = vsub.s32 2, %v989
        %v991 = vrot.slane %v475, %v990
        %v992 = vadd.f32 %v986, %v991
        %v993 = vadd.f32 %v987, %v991
        %v994 = vld [vmem:[%s377] sm:$0xff]
        %v995 = vld [vmem:[%s377 + $0x8] sm:$0xff]
        %v996 = vld [vmem:[%s377 + $0x10] sm:$0xff]
        %v997 = vld [vmem:[%s377 + $0x18] sm:$0xff]
        %v998 = vlaneseq
        %v999 = vshrl.u32 %v998, 7
        %v1000 = vsub.s32 3, %v999
        %v1001 = vrot.slane %v475, %v1000
        %v1003 = vsel %vm481, %v992, 0
        %v1006 = vsel %vm481, %v993, 0
        %1008 = vmatprep.subr.mxu0 0.0
        %1009 = vmatpush1.msra.mxu0 %v994
        %1010 = vmatprep.subr.mxu0 0.0
        %1011 = vmatpush1.msra.mxu0 %v995
        %1012 = vmatprep.subr.mxu0 0.0
        %1013 = vmatpush1.msra.mxu0 %v996
        %1014 = vmatprep.subr.mxu0 0.0
        %1015 = vmatpush1.msra.mxu0 %v997
        %1016 = vmatprep.subr.mxu0 0.0
        %1017 = vmatpush1.msra.mxu0 0.0
        %1018 = vmatprep.subr.mxu0 0.0
        %1019 = vmatpush1.msra.mxu0 0.0
        %1020 = vmatprep.subr.mxu0 0.0
        %1021 = vmatpush1.msra.mxu0 0.0
        %1022 = vmatprep.subr.mxu0 0.0
        %1023 = vmatpush1.msra.mxu0 0.0
        %1024 = vmatprep.subr.mxu0 0.0
        %1025 = vmatpush1.msra.mxu0 0.0
        %1026 = vmatprep.subr.mxu0 0.0
        %1027 = vmatpush1.msra.mxu0 0.0
        %1028 = vmatprep.subr.mxu0 0.0
        %1029 = vmatpush1.msra.mxu0 0.0
        %1030 = vmatprep.subr.mxu0 0.0
        %1031 = vmatpush1.msra.mxu0 0.0
        %1032 = vmatprep.subr.mxu0 0.0
        %1033 = vmatpush1.msra.mxu0 0.0
        %1034 = vmatprep.subr.mxu0 0.0
        %1035 = vmatpush1.msra.mxu0 0.0
        %1036 = vmatprep.subr.mxu0 0.0
        %1037 = vmatpush1.msra.mxu0 0.0
        %1038 = vmatprep.subr.mxu0 0.0
        %1039 = vmatpush1.msra.mxu0 0.0
        %1040 = vmatprep.subr.mxu0 0.0
        %1041 = vmatpush1.msra.mxu0 0.0
        %1042 = vmatprep.subr.mxu0 0.0
        %1043 = vmatpush1.msra.mxu0 0.0
        %1044 = vmatprep.subr.mxu0 0.0
        %1045 = vmatpush1.msra.mxu0 0.0
        %1046 = vmatprep.subr.mxu0 0.0
        %1047 = vmatpush1.msra.mxu0 0.0
        %1048 = vmatprep.subr.mxu0 0.0
        %1049 = vmatpush1.msra.mxu0 0.0
        %1050 = vmatprep.subr.mxu0 0.0
        %1051 = vmatpush1.msra.mxu0 0.0
        %1052 = vmatprep.subr.mxu0 0.0
        %1053 = vmatpush1.msra.mxu0 0.0
        %1054 = vmatprep.subr.mxu0 0.0
        %1055 = vmatpush1.msra.mxu0 0.0
        %1056 = vmatprep.subr.mxu0 0.0
        %1057 = vmatpush1.msra.mxu0 0.0
        %1058 = vmatprep.subr.mxu0 0.0
        %1059 = vmatpush1.msra.mxu0 0.0
        %1060 = vmatprep.subr.mxu0 0.0
        %1061 = vmatpush1.msra.mxu0 0.0
        %1062 = vmatprep.subr.mxu0 0.0
        %1063 = vmatpush1.msra.mxu0 0.0
        %1064 = vmatprep.subr.mxu0 0.0
        %1065 = vmatpush1.msra.mxu0 0.0
        %1066 = vmatprep.subr.mxu0 0.0
        %1067 = vmatpush1.msra.mxu0 0.0
        %1068 = vmatprep.subr.mxu0 0.0
        %1069 = vmatpush1.msra.mxu0 0.0
        %1070 = vmatprep.subr.mxu0 0.0
        %1071 = vmatpush1.msra.mxu0 0.0
        %1072 = vmatprep.mubr.f32.mxu0 0.0
        %1073 = vmatmul.mubr.f32.gmra.mrb[0].mxu0 %v1003
        %v1074 = vpop.f32.mrb[0].mxu0
        %v1075 = vadd.f32 %v1001, %v1074
        %v1076 = vpop.f32.mrb[0].mxu0
        %1077 = vmatprep.mubr.f32.mxu0 0.0
        %1078 = vmatmul.mubr.f32.gmra.mrb[0].mxu0 %v1006
        %v1079 = vpop.f32.mrb[0].mxu0
        %v1080 = vadd.f32 %v1001, %v1079
        %v1081 = vpop.f32.mrb[0].mxu0
        %1082 = vdwg.mxu0
        %v1083 = vadd.f32 %v471, %v1075
        %v1084 = vadd.f32 %v472, %v1080
        %v1085 = vsel %vm481, %v1083, 0.0
        %1086 = vadd.xlane.f32.xlu0 %v1085
        %v1087 = vpop.xlane.xlu0 %1086
        %v1088 = vsel %vm481, %v1084, 0.0
        %1089 = vadd.xlane.f32.xlu0 %v1088
        %v1090 = vpop.xlane.xlu0 %1089
        %v1091 = vrcp.pop 32.0
        %v1092 = vmul.f32 %v1087, %v1091
        %v1093 = vmul.f32 %v1090, %v1091
        %v1094 = vsub.f32 %v1083, %v1092
        %v1095 = vsub.f32 %v1084, %v1093
        %v1096 = vmul.f32 %v1094, %v1094
        %v1097 = vmul.f32 %v1095, %v1095
        %v1098 = vsel %vm481, %v1096, 0.0
        %1099 = vadd.xlane.f32.xlu0 %v1098
        %v1100 = vpop.xlane.xlu0 %1099
        %v1101 = vsel %vm481, %v1097, 0.0
        %1102 = vadd.xlane.f32.xlu0 %v1101
        %v1103 = vpop.xlane.xlu0 %1102
        %v1104 = vmul.f32 %v1100, %v1091
        %v1105 = vmul.f32 %v1103, %v1091
        %v1106 = vadd.f32 %v1104, 1e-05
        %v1107 = vadd.f32 %v1105, 1e-05
        %v1108 = vrsqrt.pop %v1106
        %v1109 = vrsqrt.pop %v1107
        %v1110 = vmul.f32 %v1094, %v1108
        %v1111 = vmul.f32 %v1095, %v1109
        %v1112 = vlaneseq
        %v1113 = vshrl.u32 %v1112, 7
        %v1114 = vsub.s32 5, %v1113
        %v1115 = vrot.slane %v475, %v1114
        %v1116 = vmul.f32 %v1110, %v1115
        %v1117 = vmul.f32 %v1111, %v1115
        %v1118 = vlaneseq
        %v1119 = vshrl.u32 %v1118, 7
        %v1120 = vsub.s32 6, %v1119
        %v1121 = vrot.slane %v475, %v1120
        %v1122 = vadd.f32 %v1116, %v1121
        %v1123 = vadd.f32 %v1117, %v1121
        %v1124 = vpack.c.bf16 %v1123, %v1122
        %v1125 = vld [vmem:[%s386] sm:$0xff]
        %v1126 = vld [vmem:[%s386 + $0x8] sm:$0xff]
        %v1127 = vld [vmem:[%s386 + $0x40] sm:$0xff]
        %v1128 = vld [vmem:[%s386 + $0x48] sm:$0xff]
        %v1129 = vld [vmem:[%s386 + $0x80] sm:$0xff]
        %v1130 = vld [vmem:[%s386 + $0x88] sm:$0xff]
        %v1131 = vld [vmem:[%s386 + $0xc0] sm:$0xff]
        %v1132 = vld [vmem:[%s386 + $0xc8] sm:$0xff]
        %v1133 = vld [vmem:[%s455] sm:$0xf]
        %v1135 = vlaneseq
        %v1136 = vshrl.u32 %v1135, 7
        %v1137 = vsub.s32 0, %v1136
        %v1138 = vrot.slane %v1133, %v1137
        %v1139 = vlaneseq
        %v1140 = vshrl.u32 %v1139, 7
        %v1141 = vsub.s32 1, %v1140
        %v1142 = vrot.slane %v1133, %v1141
        %v1143 = vlaneseq
        %v1144 = vshrl.u32 %v1143, 7
        %v1145 = vsub.s32 2, %v1144
        %v1146 = vrot.slane %v1133, %v1145
        %v1147 = vlaneseq
        %v1148 = vshrl.u32 %v1147, 7
        %v1149 = vsub.s32 3, %v1148
        %v1150 = vrot.slane %v1133, %v1149
        %v1163 = vunpack.c.l.b16 %v1125
        %v1164 = vunpack.c.h.b16 %v1125
        %v1165 = vunpack.c.l.b16 %v1126
        %v1166 = vunpack.c.h.b16 %v1126
        %v1167 = vunpack.c.l.b16 %v1127
        %v1168 = vunpack.c.h.b16 %v1127
        %v1169 = vunpack.c.l.b16 %v1128
        %v1170 = vunpack.c.h.b16 %v1128
        %v1171 = vunpack.c.l.b16 %v1129
        %v1172 = vunpack.c.h.b16 %v1129
        %v1173 = vunpack.c.l.b16 %v1130
        %v1174 = vunpack.c.h.b16 %v1130
        %v1175 = vunpack.c.l.b16 %v1131
        %v1176 = vunpack.c.h.b16 %v1131
        %v1177 = vunpack.c.l.b16 %v1132
        %v1178 = vunpack.c.h.b16 %v1132
        %v1179 = vpack.c.b16 %v1167, %v1163
        %v1180 = vpack.c.b16 %v1168, %v1164
        %v1181 = vpack.c.b16 %v1169, %v1165
        %v1182 = vpack.c.b16 %v1170, %v1166
        %v1183 = vpack.c.b16 %v1175, %v1171
        %v1184 = vpack.c.b16 %v1176, %v1172
        %v1185 = vpack.c.b16 %v1177, %v1173
        %v1186 = vpack.c.b16 %v1178, %v1174
        %v1196 = vsel %vm481, %v1124, 0
        %1198 = vmatprep.subr.bf16.mxu0 %v1180
        %1199 = vmatpush1.bf16.msra.mxu0 %v1179
        %1200 = vmatprep.subr.bf16.mxu0 %v1184
        %1201 = vmatpush1.bf16.msra.mxu0 %v1183
        %1202 = vmatprep.subr.bf16.mxu0 0
        %1203 = vmatpush1.bf16.msra.mxu0 0
        %1204 = vmatprep.subr.bf16.mxu0 0
        %1205 = vmatpush1.bf16.msra.mxu0 0
        %1206 = vmatprep.subr.bf16.mxu0 0
        %1207 = vmatpush1.bf16.msra.mxu0 0
        %1208 = vmatprep.subr.bf16.mxu0 0
        %1209 = vmatpush1.bf16.msra.mxu0 0
        %1210 = vmatprep.subr.bf16.mxu0 0
        %1211 = vmatpush1.bf16.msra.mxu0 0
        %1212 = vmatprep.subr.bf16.mxu0 0
        %1213 = vmatpush1.bf16.msra.mxu0 0
        %1214 = vmatprep.subr.bf16.mxu0 0
        %1215 = vmatpush1.bf16.msra.mxu0 0
        %1216 = vmatprep.subr.bf16.mxu0 0
        %1217 = vmatpush1.bf16.msra.mxu0 0
        %1218 = vmatprep.subr.bf16.mxu0 0
        %1219 = vmatpush1.bf16.msra.mxu0 0
        %1220 = vmatprep.subr.bf16.mxu0 0
        %1221 = vmatpush1.bf16.msra.mxu0 0
        %1222 = vmatprep.subr.bf16.mxu0 0
        %1223 = vmatpush1.bf16.msra.mxu0 0
        %1224 = vmatprep.subr.bf16.mxu0 0
        %1225 = vmatpush1.bf16.msra.mxu0 0
        %1226 = vmatprep.subr.bf16.mxu0 0
        %1227 = vmatpush1.bf16.msra.mxu0 0
        %1228 = vmatprep.subr.bf16.mxu0 0
        %1229 = vmatpush1.bf16.msra.mxu0 0
        %1230 = vmatprep.mubr.bf16.mxu0 0
        %1231 = vmatmul.mubr.bf16.gmra.mrb[0].mxu0 %v1196
        %v1232 = vpop.f32.mrb[0].mxu0
        %v1233 = vadd.f32 %v1138, %v1232
        %v1234 = vpop.f32.mrb[0].mxu0
        %v1235 = vadd.f32 %v1142, %v1234
        %v1236 = vpop.f32.mrb[0].mxu0
        %v1237 = vadd.f32 %v1138, %v1236
        %v1238 = vpop.f32.mrb[0].mxu0
        %v1239 = vadd.f32 %v1142, %v1238
        %1240 = vdwg.mxu0
        %1241 = vmatprep.subr.bf16.mxu0 %v1182
        %1242 = vmatpush1.bf16.msra.mxu0 %v1181
        %1243 = vmatprep.subr.bf16.mxu0 %v1186
        %1244 = vmatpush1.bf16.msra.mxu0 %v1185
        %1245 = vmatprep.subr.bf16.mxu0 0
        %1246 = vmatpush1.bf16.msra.mxu0 0
        %1247 = vmatprep.subr.bf16.mxu0 0
        %1248 = vmatpush1.bf16.msra.mxu0 0
        %1249 = vmatprep.subr.bf16.mxu0 0
        %1250 = vmatpush1.bf16.msra.mxu0 0
        %1251 = vmatprep.subr.bf16.mxu0 0
        %1252 = vmatpush1.bf16.msra.mxu0 0
        %1253 = vmatprep.subr.bf16.mxu0 0
        %1254 = vmatpush1.bf16.msra.mxu0 0
        %1255 = vmatprep.subr.bf16.mxu0 0
        %1256 = vmatpush1.bf16.msra.mxu0 0
        %1257 = vmatprep.subr.bf16.mxu0 0
        %1258 = vmatpush1.bf16.msra.mxu0 0
        %1259 = vmatprep.subr.bf16.mxu0 0
        %1260 = vmatpush1.bf16.msra.mxu0 0
        %1261 = vmatprep.subr.bf16.mxu0 0
        %1262 = vmatpush1.bf16.msra.mxu0 0
        %1263 = vmatprep.subr.bf16.mxu0 0
        %1264 = vmatpush1.bf16.msra.mxu0 0
        %1265 = vmatprep.subr.bf16.mxu0 0
        %1266 = vmatpush1.bf16.msra.mxu0 0
        %1267 = vmatprep.subr.bf16.mxu0 0
        %1268 = vmatpush1.bf16.msra.mxu0 0
        %1269 = vmatprep.subr.bf16.mxu0 0
        %1270 = vmatpush1.bf16.msra.mxu0 0
        %1271 = vmatprep.subr.bf16.mxu0 0
        %1272 = vmatpush1.bf16.msra.mxu0 0
        %1273 = vmatprep.mubr.bf16.mxu0 0
        %1274 = vmatmul.mubr.bf16.gmra.mrb[0].mxu0 %v1196
        %v1275 = vpop.f32.mrb[0].mxu0
        %v1276 = vadd.f32 %v1146, %v1275
        %v1277 = vpop.f32.mrb[0].mxu0
        %v1278 = vadd.f32 %v1150, %v1277
        %v1279 = vpop.f32.mrb[0].mxu0
        %v1280 = vadd.f32 %v1146, %v1279
        %v1281 = vpop.f32.mrb[0].mxu0
        %v1282 = vadd.f32 %v1150, %v1281
        %1283 = vdwg.mxu0
        %v1284 = vmax.f32 %v1233, 0.0
        %v1285 = vmax.f32 %v1235, 0.0
        %v1286 = vmax.f32 %v1276, 0.0
        %v1287 = vmax.f32 %v1278, 0.0
        %v1288 = vmax.f32 %v1237, 0.0
        %v1289 = vmax.f32 %v1239, 0.0
        %v1290 = vmax.f32 %v1280, 0.0
        %v1291 = vmax.f32 %v1282, 0.0
        %v1292 = vpack.c.bf16 %v1288, %v1284
        %v1293 = vpack.c.bf16 %v1289, %v1285
        %v1294 = vpack.c.bf16 %v1290, %v1286
        %v1295 = vpack.c.bf16 %v1291, %v1287
        %v1296 = vld [vmem:[%s395] sm:$0xff]
        %v1297 = vld [vmem:[%s395 + $0x8] sm:$0xff]
        %v1298 = vld [vmem:[%s395 + $0x40] sm:$0xff]
        %v1299 = vld [vmem:[%s395 + $0x48] sm:$0xff]
        %v1300 = vld [vmem:[%s395 + $0x80] sm:$0xff]
        %v1301 = vld [vmem:[%s395 + $0x88] sm:$0xff]
        %v1302 = vld [vmem:[%s395 + $0xc0] sm:$0xff]
        %v1303 = vld [vmem:[%s395 + $0xc8] sm:$0xff]
        %v1304 = vld [vmem:[%s386 + $0x10] sm:$0xff]
        %v1305 = vld [vmem:[%s386 + $0x18] sm:$0xff]
        %v1306 = vld [vmem:[%s386 + $0x50] sm:$0xff]
        %v1307 = vld [vmem:[%s386 + $0x58] sm:$0xff]
        %v1308 = vld [vmem:[%s386 + $0x90] sm:$0xff]
        %v1309 = vld [vmem:[%s386 + $0x98] sm:$0xff]
        %v1310 = vld [vmem:[%s386 + $0xd0] sm:$0xff]
        %v1311 = vld [vmem:[%s386 + $0xd8] sm:$0xff]
        %v1312 = vld [vmem:[%s455 + $0x4] sm:$0xf]
        %v1314 = vlaneseq
        %v1315 = vshrl.u32 %v1314, 7
        %v1316 = vsub.s32 0, %v1315
        %v1317 = vrot.slane %v1312, %v1316
        %v1318 = vlaneseq
        %v1319 = vshrl.u32 %v1318, 7
        %v1320 = vsub.s32 1, %v1319
        %v1321 = vrot.slane %v1312, %v1320
        %v1322 = vlaneseq
        %v1323 = vshrl.u32 %v1322, 7
        %v1324 = vsub.s32 2, %v1323
        %v1325 = vrot.slane %v1312, %v1324
        %v1326 = vlaneseq
        %v1327 = vshrl.u32 %v1326, 7
        %v1328 = vsub.s32 3, %v1327
        %v1329 = vrot.slane %v1312, %v1328
        %v1342 = vunpack.c.l.b16 %v1304
        %v1343 = vunpack.c.h.b16 %v1304
        %v1344 = vunpack.c.l.b16 %v1305
        %v1345 = vunpack.c.h.b16 %v1305
        %v1346 = vunpack.c.l.b16 %v1306
        %v1347 = vunpack.c.h.b16 %v1306
        %v1348 = vunpack.c.l.b16 %v1307
        %v1349 = vunpack.c.h.b16 %v1307
        %v1350 = vunpack.c.l.b16 %v1308
        %v1351 = vunpack.c.h.b16 %v1308
        %v1352 = vunpack.c.l.b16 %v1309
        %v1353 = vunpack.c.h.b16 %v1309
        %v1354 = vunpack.c.l.b16 %v1310
        %v1355 = vunpack.c.h.b16 %v1310
        %v1356 = vunpack.c.l.b16 %v1311
        %v1357 = vunpack.c.h.b16 %v1311
        %v1358 = vpack.c.b16 %v1346, %v1342
        %v1359 = vpack.c.b16 %v1347, %v1343
        %v1360 = vpack.c.b16 %v1348, %v1344
        %v1361 = vpack.c.b16 %v1349, %v1345
        %v1362 = vpack.c.b16 %v1354, %v1350
        %v1363 = vpack.c.b16 %v1355, %v1351
        %v1364 = vpack.c.b16 %v1356, %v1352
        %v1365 = vpack.c.b16 %v1357, %v1353
        %1374 = vmatprep.subr.bf16.mxu0 %v1359
        %1375 = vmatpush1.bf16.msra.mxu0 %v1358
        %1376 = vmatprep.subr.bf16.mxu0 %v1363
        %1377 = vmatpush1.bf16.msra.mxu0 %v1362
        %1378 = vmatprep.subr.bf16.mxu0 0
        %1379 = vmatpush1.bf16.msra.mxu0 0
        %1380 = vmatprep.subr.bf16.mxu0 0
        %1381 = vmatpush1.bf16.msra.mxu0 0
        %1382 = vmatprep.subr.bf16.mxu0 0
        %1383 = vmatpush1.bf16.msra.mxu0 0
        %1384 = vmatprep.subr.bf16.mxu0 0
        %1385 = vmatpush1.bf16.msra.mxu0 0
        %1386 = vmatprep.subr.bf16.mxu0 0
        %1387 = vmatpush1.bf16.msra.mxu0 0
        %1388 = vmatprep.subr.bf16.mxu0 0
        %1389 = vmatpush1.bf16.msra.mxu0 0
        %1390 = vmatprep.subr.bf16.mxu0 0
        %1391 = vmatpush1.bf16.msra.mxu0 0
        %1392 = vmatprep.subr.bf16.mxu0 0
        %1393 = vmatpush1.bf16.msra.mxu0 0
        %1394 = vmatprep.subr.bf16.mxu0 0
        %1395 = vmatpush1.bf16.msra.mxu0 0
        %1396 = vmatprep.subr.bf16.mxu0 0
        %1397 = vmatpush1.bf16.msra.mxu0 0
        %1398 = vmatprep.subr.bf16.mxu0 0
        %1399 = vmatpush1.bf16.msra.mxu0 0
        %1400 = vmatprep.subr.bf16.mxu0 0
        %1401 = vmatpush1.bf16.msra.mxu0 0
        %1402 = vmatprep.subr.bf16.mxu0 0
        %1403 = vmatpush1.bf16.msra.mxu0 0
        %1404 = vmatprep.subr.bf16.mxu0 0
        %1405 = vmatpush1.bf16.msra.mxu0 0
        %1406 = vmatprep.mubr.bf16.mxu0 0
        %1407 = vmatmul.mubr.bf16.gmra.mrb[0].mxu0 %v1196
        %v1408 = vpop.f32.mrb[0].mxu0
        %v1409 = vadd.f32 %v1317, %v1408
        %v1410 = vpop.f32.mrb[0].mxu0
        %v1411 = vadd.f32 %v1321, %v1410
        %v1412 = vpop.f32.mrb[0].mxu0
        %v1413 = vadd.f32 %v1317, %v1412
        %v1414 = vpop.f32.mrb[0].mxu0
        %v1415 = vadd.f32 %v1321, %v1414
        %1416 = vdwg.mxu0
        %1417 = vmatprep.subr.bf16.mxu0 %v1361
        %1418 = vmatpush1.bf16.msra.mxu0 %v1360
        %1419 = vmatprep.subr.bf16.mxu0 %v1365
        %1420 = vmatpush1.bf16.msra.mxu0 %v1364
        %1421 = vmatprep.subr.bf16.mxu0 0
        %1422 = vmatpush1.bf16.msra.mxu0 0
        %1423 = vmatprep.subr.bf16.mxu0 0
        %1424 = vmatpush1.bf16.msra.mxu0 0
        %1425 = vmatprep.subr.bf16.mxu0 0
        %1426 = vmatpush1.bf16.msra.mxu0 0
        %1427 = vmatprep.subr.bf16.mxu0 0
        %1428 = vmatpush1.bf16.msra.mxu0 0
        %1429 = vmatprep.subr.bf16.mxu0 0
        %1430 = vmatpush1.bf16.msra.mxu0 0
        %1431 = vmatprep.subr.bf16.mxu0 0
        %1432 = vmatpush1.bf16.msra.mxu0 0
        %1433 = vmatprep.subr.bf16.mxu0 0
        %1434 = vmatpush1.bf16.msra.mxu0 0
        %1435 = vmatprep.subr.bf16.mxu0 0
        %1436 = vmatpush1.bf16.msra.mxu0 0
        %1437 = vmatprep.subr.bf16.mxu0 0
        %1438 = vmatpush1.bf16.msra.mxu0 0
        %1439 = vmatprep.subr.bf16.mxu0 0
        %1440 = vmatpush1.bf16.msra.mxu0 0
        %1441 = vmatprep.subr.bf16.mxu0 0
        %1442 = vmatpush1.bf16.msra.mxu0 0
        %1443 = vmatprep.subr.bf16.mxu0 0
        %1444 = vmatpush1.bf16.msra.mxu0 0
        %1445 = vmatprep.subr.bf16.mxu0 0
        %1446 = vmatpush1.bf16.msra.mxu0 0
        %1447 = vmatprep.subr.bf16.mxu0 0
        %1448 = vmatpush1.bf16.msra.mxu0 0
        %1449 = vmatprep.mubr.bf16.mxu0 0
        %1450 = vmatmul.mubr.bf16.gmra.mrb[0].mxu0 %v1196
        %v1451 = vpop.f32.mrb[0].mxu0
        %v1452 = vadd.f32 %v1325, %v1451
        %v1453 = vpop.f32.mrb[0].mxu0
        %v1454 = vadd.f32 %v1329, %v1453
        %v1455 = vpop.f32.mrb[0].mxu0
        %v1456 = vadd.f32 %v1325, %v1455
        %v1457 = vpop.f32.mrb[0].mxu0
        %v1458 = vadd.f32 %v1329, %v1457
        %1459 = vdwg.mxu0
        %v1460 = vmax.f32 %v1409, 0.0
        %v1461 = vmax.f32 %v1411, 0.0
        %v1462 = vmax.f32 %v1452, 0.0
        %v1463 = vmax.f32 %v1454, 0.0
        %v1464 = vmax.f32 %v1413, 0.0
        %v1465 = vmax.f32 %v1415, 0.0
        %v1466 = vmax.f32 %v1456, 0.0
        %v1467 = vmax.f32 %v1458, 0.0
        %v1468 = vpack.c.bf16 %v1464, %v1460
        %v1469 = vpack.c.bf16 %v1465, %v1461
        %v1470 = vpack.c.bf16 %v1466, %v1462
        %v1471 = vpack.c.bf16 %v1467, %v1463
        %v1472 = vld [vmem:[%s395 + $0x10] sm:$0xff]
        %v1473 = vld [vmem:[%s395 + $0x18] sm:$0xff]
        %v1474 = vld [vmem:[%s395 + $0x50] sm:$0xff]
        %v1475 = vld [vmem:[%s395 + $0x58] sm:$0xff]
        %v1476 = vld [vmem:[%s395 + $0x90] sm:$0xff]
        %v1477 = vld [vmem:[%s395 + $0x98] sm:$0xff]
        %v1478 = vld [vmem:[%s395 + $0xd0] sm:$0xff]
        %v1479 = vld [vmem:[%s395 + $0xd8] sm:$0xff]
        %v1488 = vunpack.c.l.b16 %v1472
        %v1489 = vunpack.c.h.b16 %v1472
        %v1490 = vunpack.c.l.b16 %v1473
        %v1491 = vunpack.c.h.b16 %v1473
        %v1492 = vunpack.c.l.b16 %v1474
        %v1493 = vunpack.c.h.b16 %v1474
        %v1494 = vunpack.c.l.b16 %v1475
        %v1495 = vunpack.c.h.b16 %v1475
        %v1496 = vunpack.c.l.b16 %v1476
        %v1497 = vunpack.c.h.b16 %v1476
        %v1498 = vunpack.c.l.b16 %v1477
        %v1499 = vunpack.c.h.b16 %v1477
        %v1500 = vunpack.c.l.b16 %v1478
        %v1501 = vunpack.c.h.b16 %v1478
        %v1502 = vunpack.c.l.b16 %v1479
        %v1503 = vunpack.c.h.b16 %v1479
        %v1504 = vpack.c.b16 %v1492, %v1488
        %v1505 = vpack.c.b16 %v1493, %v1489
        %v1506 = vpack.c.b16 %v1494, %v1490
        %v1507 = vpack.c.b16 %v1495, %v1491
        %v1508 = vpack.c.b16 %v1500, %v1496
        %v1509 = vpack.c.b16 %v1501, %v1497
        %v1510 = vpack.c.b16 %v1502, %v1498
        %v1511 = vpack.c.b16 %v1503, %v1499
        %1520 = vmatprep.subr.bf16.mxu0 %v1505
        %1521 = vmatpush1.bf16.xpose.msra.mxu0 %v1504
        %1522 = vmatprep.subr.bf16.mxu0 %v1509
        %1523 = vmatpush1.bf16.xpose.msra.mxu0 %v1508
        %1524 = vmatprep.subr.bf16.mxu0 0
        %1525 = vmatpush1.bf16.xpose.msra.mxu0 0
        %1526 = vmatprep.subr.bf16.mxu0 0
        %1527 = vmatpush1.bf16.xpose.msra.mxu0 0
        %1528 = vmatprep.subr.bf16.mxu0 0
        %1529 = vmatpush1.bf16.xpose.msra.mxu0 0
        %1530 = vmatprep.subr.bf16.mxu0 0
        %1531 = vmatpush1.bf16.xpose.msra.mxu0 0
        %1532 = vmatprep.subr.bf16.mxu0 0
        %1533 = vmatpush1.bf16.xpose.msra.mxu0 0
        %1534 = vmatprep.subr.bf16.mxu0 0
        %1535 = vmatpush1.bf16.xpose.msra.mxu0 0
        %1536 = vmatprep.subr.bf16.mxu0 0
        %1537 = vmatpush1.bf16.xpose.msra.mxu0 0
        %1538 = vmatprep.subr.bf16.mxu0 0
        %1539 = vmatpush1.bf16.xpose.msra.mxu0 0
        %1540 = vmatprep.subr.bf16.mxu0 0
        %1541 = vmatpush1.bf16.xpose.msra.mxu0 0
        %1542 = vmatprep.subr.bf16.mxu0 0
        %1543 = vmatpush1.bf16.xpose.msra.mxu0 0
        %1544 = vmatprep.subr.bf16.mxu0 0
        %1545 = vmatpush1.bf16.xpose.msra.mxu0 0
        %1546 = vmatprep.subr.bf16.mxu0 0
        %1547 = vmatpush1.bf16.xpose.msra.mxu0 0
        %1548 = vmatprep.subr.bf16.mxu0 0
        %1549 = vmatpush1.bf16.xpose.msra.mxu0 0
        %1550 = vmatprep.subr.bf16.mxu0 0
        %1551 = vmatpush1.bf16.xpose.msra.mxu0 0
        %1552 = vmatprep.mubr.bf16.mxu0 %v1469
        %1553 = vmatmul.mubr.bf16.gmra.mrb[0].mxu0 %v1468
        %v1554 = vpop.f32.mrb[0].mxu0
        %v1555 = vadd.f32 0.0, %v1554
        %v1556 = vpop.f32.mrb[0].mxu0
        %v1557 = vpop.f32.mrb[0].mxu0
        %v1558 = vadd.f32 0.0, %v1557
        %v1559 = vpop.f32.mrb[0].mxu0
        %1560 = vdwg.mxu0
        %1561 = vmatprep.subr.bf16.mxu0 %v1507
        %1562 = vmatpush1.bf16.xpose.msra.mxu0 %v1506
        %1563 = vmatprep.subr.bf16.mxu0 %v1511
        %1564 = vmatpush1.bf16.xpose.msra.mxu0 %v1510
        %1565 = vmatprep.subr.bf16.mxu0 0
        %1566 = vmatpush1.bf16.xpose.msra.mxu0 0
        %1567 = vmatprep.subr.bf16.mxu0 0
        %1568 = vmatpush1.bf16.xpose.msra.mxu0 0
        %1569 = vmatprep.subr.bf16.mxu0 0
        %1570 = vmatpush1.bf16.xpose.msra.mxu0 0
        %1571 = vmatprep.subr.bf16.mxu0 0
        %1572 = vmatpush1.bf16.xpose.msra.mxu0 0
        %1573 = vmatprep.subr.bf16.mxu0 0
        %1574 = vmatpush1.bf16.xpose.msra.mxu0 0
        %1575 = vmatprep.subr.bf16.mxu0 0
        %1576 = vmatpush1.bf16.xpose.msra.mxu0 0
        %1577 = vmatprep.subr.bf16.mxu0 0
        %1578 = vmatpush1.bf16.xpose.msra.mxu0 0
        %1579 = vmatprep.subr.bf16.mxu0 0
        %1580 = vmatpush1.bf16.xpose.msra.mxu0 0
        %1581 = vmatprep.subr.bf16.mxu0 0
        %1582 = vmatpush1.bf16.xpose.msra.mxu0 0
        %1583 = vmatprep.subr.bf16.mxu0 0
        %1584 = vmatpush1.bf16.xpose.msra.mxu0 0
        %1585 = vmatprep.subr.bf16.mxu0 0
        %1586 = vmatpush1.bf16.xpose.msra.mxu0 0
        %1587 = vmatprep.subr.bf16.mxu0 0
        %1588 = vmatpush1.bf16.xpose.msra.mxu0 0
        %1589 = vmatprep.subr.bf16.mxu0 0
        %1590 = vmatpush1.bf16.xpose.msra.mxu0 0
        %1591 = vmatprep.subr.bf16.mxu0 0
        %1592 = vmatpush1.bf16.xpose.msra.mxu0 0
        %1593 = vmatprep.mubr.bf16.mxu0 %v1471
        %1594 = vmatmul.mubr.bf16.gmra.mrb[0].mxu0 %v1470
        %v1595 = vpop.f32.mrb[0].mxu0
        %v1596 = vadd.f32 %v1555, %v1595
        %v1597 = vpop.f32.mrb[0].mxu0
        %v1598 = vpop.f32.mrb[0].mxu0
        %v1599 = vadd.f32 %v1558, %v1598
        %v1600 = vpop.f32.mrb[0].mxu0
        %1601 = vdwg.mxu0
        %v1610 = vunpack.c.l.b16 %v1296
        %v1611 = vunpack.c.h.b16 %v1296
        %v1612 = vunpack.c.l.b16 %v1297
        %v1613 = vunpack.c.h.b16 %v1297
        %v1614 = vunpack.c.l.b16 %v1298
        %v1615 = vunpack.c.h.b16 %v1298
        %v1616 = vunpack.c.l.b16 %v1299
        %v1617 = vunpack.c.h.b16 %v1299
        %v1618 = vunpack.c.l.b16 %v1300
        %v1619 = vunpack.c.h.b16 %v1300
        %v1620 = vunpack.c.l.b16 %v1301
        %v1621 = vunpack.c.h.b16 %v1301
        %v1622 = vunpack.c.l.b16 %v1302
        %v1623 = vunpack.c.h.b16 %v1302
        %v1624 = vunpack.c.l.b16 %v1303
        %v1625 = vunpack.c.h.b16 %v1303
        %v1626 = vpack.c.b16 %v1614, %v1610
        %v1627 = vpack.c.b16 %v1615, %v1611
        %v1628 = vpack.c.b16 %v1616, %v1612
        %v1629 = vpack.c.b16 %v1617, %v1613
        %v1630 = vpack.c.b16 %v1622, %v1618
        %v1631 = vpack.c.b16 %v1623, %v1619
        %v1632 = vpack.c.b16 %v1624, %v1620
        %v1633 = vpack.c.b16 %v1625, %v1621
        %1642 = vmatprep.subr.bf16.mxu0 %v1627
        %1643 = vmatpush1.bf16.xpose.msra.mxu0 %v1626
        %1644 = vmatprep.subr.bf16.mxu0 %v1631
        %1645 = vmatpush1.bf16.xpose.msra.mxu0 %v1630
        %1646 = vmatprep.subr.bf16.mxu0 0
        %1647 = vmatpush1.bf16.xpose.msra.mxu0 0
        %1648 = vmatprep.subr.bf16.mxu0 0
        %1649 = vmatpush1.bf16.xpose.msra.mxu0 0
        %1650 = vmatprep.subr.bf16.mxu0 0
        %1651 = vmatpush1.bf16.xpose.msra.mxu0 0
        %1652 = vmatprep.subr.bf16.mxu0 0
        %1653 = vmatpush1.bf16.xpose.msra.mxu0 0
        %1654 = vmatprep.subr.bf16.mxu0 0
        %1655 = vmatpush1.bf16.xpose.msra.mxu0 0
        %1656 = vmatprep.subr.bf16.mxu0 0
        %1657 = vmatpush1.bf16.xpose.msra.mxu0 0
        %1658 = vmatprep.subr.bf16.mxu0 0
        %1659 = vmatpush1.bf16.xpose.msra.mxu0 0
        %1660 = vmatprep.subr.bf16.mxu0 0
        %1661 = vmatpush1.bf16.xpose.msra.mxu0 0
        %1662 = vmatprep.subr.bf16.mxu0 0
        %1663 = vmatpush1.bf16.xpose.msra.mxu0 0
        %1664 = vmatprep.subr.bf16.mxu0 0
        %1665 = vmatpush1.bf16.xpose.msra.mxu0 0
        %1666 = vmatprep.subr.bf16.mxu0 0
        %1667 = vmatpush1.bf16.xpose.msra.mxu0 0
        %1668 = vmatprep.subr.bf16.mxu0 0
        %1669 = vmatpush1.bf16.xpose.msra.mxu0 0
        %1670 = vmatprep.subr.bf16.mxu0 0
        %1671 = vmatpush1.bf16.xpose.msra.mxu0 0
        %1672 = vmatprep.subr.bf16.mxu0 0
        %1673 = vmatpush1.bf16.xpose.msra.mxu0 0
        %1674 = vmatprep.mubr.bf16.mxu0 %v1293
        %1675 = vmatmul.mubr.bf16.gmra.mrb[0].mxu0 %v1292
        %v1676 = vpop.f32.mrb[0].mxu0
        %v1677 = vadd.f32 %v1596, %v1676
        %v1678 = vpop.f32.mrb[0].mxu0
        %v1679 = vpop.f32.mrb[0].mxu0
        %v1680 = vadd.f32 %v1599, %v1679
        %v1681 = vpop.f32.mrb[0].mxu0
        %1682 = vdwg.mxu0
        %1683 = vmatprep.subr.bf16.mxu0 %v1629
        %1684 = vmatpush1.bf16.xpose.msra.mxu0 %v1628
        %1685 = vmatprep.subr.bf16.mxu0 %v1633
        %1686 = vmatpush1.bf16.xpose.msra.mxu0 %v1632
        %1687 = vmatprep.subr.bf16.mxu0 0
        %1688 = vmatpush1.bf16.xpose.msra.mxu0 0
        %1689 = vmatprep.subr.bf16.mxu0 0
        %1690 = vmatpush1.bf16.xpose.msra.mxu0 0
        %1691 = vmatprep.subr.bf16.mxu0 0
        %1692 = vmatpush1.bf16.xpose.msra.mxu0 0
        %1693 = vmatprep.subr.bf16.mxu0 0
        %1694 = vmatpush1.bf16.xpose.msra.mxu0 0
        %1695 = vmatprep.subr.bf16.mxu0 0
        %1696 = vmatpush1.bf16.xpose.msra.mxu0 0
        %1697 = vmatprep.subr.bf16.mxu0 0
        %1698 = vmatpush1.bf16.xpose.msra.mxu0 0
        %1699 = vmatprep.subr.bf16.mxu0 0
        %1700 = vmatpush1.bf16.xpose.msra.mxu0 0
        %1701 = vmatprep.subr.bf16.mxu0 0
        %1702 = vmatpush1.bf16.xpose.msra.mxu0 0
        %1703 = vmatprep.subr.bf16.mxu0 0
        %1704 = vmatpush1.bf16.xpose.msra.mxu0 0
        %1705 = vmatprep.subr.bf16.mxu0 0
        %1706 = vmatpush1.bf16.xpose.msra.mxu0 0
        %1707 = vmatprep.subr.bf16.mxu0 0
        %1708 = vmatpush1.bf16.xpose.msra.mxu0 0
        %1709 = vmatprep.subr.bf16.mxu0 0
        %1710 = vmatpush1.bf16.xpose.msra.mxu0 0
        %1711 = vmatprep.subr.bf16.mxu0 0
        %1712 = vmatpush1.bf16.xpose.msra.mxu0 0
        %1713 = vmatprep.subr.bf16.mxu0 0
        %1714 = vmatpush1.bf16.xpose.msra.mxu0 0
        %1715 = vmatprep.mubr.bf16.mxu0 %v1295
        %1716 = vmatmul.mubr.bf16.gmra.mrb[0].mxu0 %v1294
        %v1717 = vpop.f32.mrb[0].mxu0
        %v1718 = vadd.f32 %v1677, %v1717
        %v1719 = vpop.f32.mrb[0].mxu0
        %v1720 = vpop.f32.mrb[0].mxu0
        %v1721 = vadd.f32 %v1680, %v1720
        %v1722 = vpop.f32.mrb[0].mxu0
        %1723 = vdwg.mxu0
        %v1724 = vld [vmem:[%s386 + $0x20] sm:$0xff]
        %v1725 = vld [vmem:[%s386 + $0x28] sm:$0xff]
        %v1726 = vld [vmem:[%s386 + $0x60] sm:$0xff]
        %v1727 = vld [vmem:[%s386 + $0x68] sm:$0xff]
        %v1728 = vld [vmem:[%s386 + $0xa0] sm:$0xff]
        %v1729 = vld [vmem:[%s386 + $0xa8] sm:$0xff]
        %v1730 = vld [vmem:[%s386 + $0xe0] sm:$0xff]
        %v1731 = vld [vmem:[%s386 + $0xe8] sm:$0xff]
        %v1732 = vld [vmem:[%s455 + $0x8] sm:$0xf]
        %v1734 = vlaneseq
        %v1735 = vshrl.u32 %v1734, 7
        %v1736 = vsub.s32 0, %v1735
        %v1737 = vrot.slane %v1732, %v1736
        %v1738 = vlaneseq
        %v1739 = vshrl.u32 %v1738, 7
        %v1740 = vsub.s32 1, %v1739
        %v1741 = vrot.slane %v1732, %v1740
        %v1742 = vlaneseq
        %v1743 = vshrl.u32 %v1742, 7
        %v1744 = vsub.s32 2, %v1743
        %v1745 = vrot.slane %v1732, %v1744
        %v1746 = vlaneseq
        %v1747 = vshrl.u32 %v1746, 7
        %v1748 = vsub.s32 3, %v1747
        %v1749 = vrot.slane %v1732, %v1748
        %v1762 = vunpack.c.l.b16 %v1724
        %v1763 = vunpack.c.h.b16 %v1724
        %v1764 = vunpack.c.l.b16 %v1725
        %v1765 = vunpack.c.h.b16 %v1725
        %v1766 = vunpack.c.l.b16 %v1726
        %v1767 = vunpack.c.h.b16 %v1726
        %v1768 = vunpack.c.l.b16 %v1727
        %v1769 = vunpack.c.h.b16 %v1727
        %v1770 = vunpack.c.l.b16 %v1728
        %v1771 = vunpack.c.h.b16 %v1728
        %v1772 = vunpack.c.l.b16 %v1729
        %v1773 = vunpack.c.h.b16 %v1729
        %v1774 = vunpack.c.l.b16 %v1730
        %v1775 = vunpack.c.h.b16 %v1730
        %v1776 = vunpack.c.l.b16 %v1731
        %v1777 = vunpack.c.h.b16 %v1731
        %v1778 = vpack.c.b16 %v1766, %v1762
        %v1779 = vpack.c.b16 %v1767, %v1763
        %v1780 = vpack.c.b16 %v1768, %v1764
        %v1781 = vpack.c.b16 %v1769, %v1765
        %v1782 = vpack.c.b16 %v1774, %v1770
        %v1783 = vpack.c.b16 %v1775, %v1771
        %v1784 = vpack.c.b16 %v1776, %v1772
        %v1785 = vpack.c.b16 %v1777, %v1773
        %1794 = vmatprep.subr.bf16.mxu0 %v1779
        %1795 = vmatpush1.bf16.msra.mxu0 %v1778
        %1796 = vmatprep.subr.bf16.mxu0 %v1783
        %1797 = vmatpush1.bf16.msra.mxu0 %v1782
        %1798 = vmatprep.subr.bf16.mxu0 0
        %1799 = vmatpush1.bf16.msra.mxu0 0
        %1800 = vmatprep.subr.bf16.mxu0 0
        %1801 = vmatpush1.bf16.msra.mxu0 0
        %1802 = vmatprep.subr.bf16.mxu0 0
        %1803 = vmatpush1.bf16.msra.mxu0 0
        %1804 = vmatprep.subr.bf16.mxu0 0
        %1805 = vmatpush1.bf16.msra.mxu0 0
        %1806 = vmatprep.subr.bf16.mxu0 0
        %1807 = vmatpush1.bf16.msra.mxu0 0
        %1808 = vmatprep.subr.bf16.mxu0 0
        %1809 = vmatpush1.bf16.msra.mxu0 0
        %1810 = vmatprep.subr.bf16.mxu0 0
        %1811 = vmatpush1.bf16.msra.mxu0 0
        %1812 = vmatprep.subr.bf16.mxu0 0
        %1813 = vmatpush1.bf16.msra.mxu0 0
        %1814 = vmatprep.subr.bf16.mxu0 0
        %1815 = vmatpush1.bf16.msra.mxu0 0
        %1816 = vmatprep.subr.bf16.mxu0 0
        %1817 = vmatpush1.bf16.msra.mxu0 0
        %1818 = vmatprep.subr.bf16.mxu0 0
        %1819 = vmatpush1.bf16.msra.mxu0 0
        %1820 = vmatprep.subr.bf16.mxu0 0
        %1821 = vmatpush1.bf16.msra.mxu0 0
        %1822 = vmatprep.subr.bf16.mxu0 0
        %1823 = vmatpush1.bf16.msra.mxu0 0
        %1824 = vmatprep.subr.bf16.mxu0 0
        %1825 = vmatpush1.bf16.msra.mxu0 0
        %1826 = vmatprep.mubr.bf16.mxu0 0
        %1827 = vmatmul.mubr.bf16.gmra.mrb[0].mxu0 %v1196
        %v1828 = vpop.f32.mrb[0].mxu0
        %v1829 = vadd.f32 %v1737, %v1828
        %v1830 = vpop.f32.mrb[0].mxu0
        %v1831 = vadd.f32 %v1741, %v1830
        %v1832 = vpop.f32.mrb[0].mxu0
        %v1833 = vadd.f32 %v1737, %v1832
        %v1834 = vpop.f32.mrb[0].mxu0
        %v1835 = vadd.f32 %v1741, %v1834
        %1836 = vdwg.mxu0
        %1837 = vmatprep.subr.bf16.mxu0 %v1781
        %1838 = vmatpush1.bf16.msra.mxu0 %v1780
        %1839 = vmatprep.subr.bf16.mxu0 %v1785
        %1840 = vmatpush1.bf16.msra.mxu0 %v1784
        %1841 = vmatprep.subr.bf16.mxu0 0
        %1842 = vmatpush1.bf16.msra.mxu0 0
        %1843 = vmatprep.subr.bf16.mxu0 0
        %1844 = vmatpush1.bf16.msra.mxu0 0
        %1845 = vmatprep.subr.bf16.mxu0 0
        %1846 = vmatpush1.bf16.msra.mxu0 0
        %1847 = vmatprep.subr.bf16.mxu0 0
        %1848 = vmatpush1.bf16.msra.mxu0 0
        %1849 = vmatprep.subr.bf16.mxu0 0
        %1850 = vmatpush1.bf16.msra.mxu0 0
        %1851 = vmatprep.subr.bf16.mxu0 0
        %1852 = vmatpush1.bf16.msra.mxu0 0
        %1853 = vmatprep.subr.bf16.mxu0 0
        %1854 = vmatpush1.bf16.msra.mxu0 0
        %1855 = vmatprep.subr.bf16.mxu0 0
        %1856 = vmatpush1.bf16.msra.mxu0 0
        %1857 = vmatprep.subr.bf16.mxu0 0
        %1858 = vmatpush1.bf16.msra.mxu0 0
        %1859 = vmatprep.subr.bf16.mxu0 0
        %1860 = vmatpush1.bf16.msra.mxu0 0
        %1861 = vmatprep.subr.bf16.mxu0 0
        %1862 = vmatpush1.bf16.msra.mxu0 0
        %1863 = vmatprep.subr.bf16.mxu0 0
        %1864 = vmatpush1.bf16.msra.mxu0 0
        %1865 = vmatprep.subr.bf16.mxu0 0
        %1866 = vmatpush1.bf16.msra.mxu0 0
        %1867 = vmatprep.subr.bf16.mxu0 0
        %1868 = vmatpush1.bf16.msra.mxu0 0
        %1869 = vmatprep.mubr.bf16.mxu0 0
        %1870 = vmatmul.mubr.bf16.gmra.mrb[0].mxu0 %v1196
        %v1871 = vpop.f32.mrb[0].mxu0
        %v1872 = vadd.f32 %v1745, %v1871
        %v1873 = vpop.f32.mrb[0].mxu0
        %v1874 = vadd.f32 %v1749, %v1873
        %v1875 = vpop.f32.mrb[0].mxu0
        %v1876 = vadd.f32 %v1745, %v1875
        %v1877 = vpop.f32.mrb[0].mxu0
        %v1878 = vadd.f32 %v1749, %v1877
        %1879 = vdwg.mxu0
        %v1880 = vmax.f32 %v1829, 0.0
        %v1881 = vmax.f32 %v1831, 0.0
        %v1882 = vmax.f32 %v1872, 0.0
        %v1883 = vmax.f32 %v1874, 0.0
        %v1884 = vmax.f32 %v1833, 0.0
        %v1885 = vmax.f32 %v1835, 0.0
        %v1886 = vmax.f32 %v1876, 0.0
        %v1887 = vmax.f32 %v1878, 0.0
        %v1888 = vpack.c.bf16 %v1884, %v1880
        %v1889 = vpack.c.bf16 %v1885, %v1881
        %v1890 = vpack.c.bf16 %v1886, %v1882
        %v1891 = vpack.c.bf16 %v1887, %v1883
        %v1892 = vld [vmem:[%s395 + $0x20] sm:$0xff]
        %v1893 = vld [vmem:[%s395 + $0x28] sm:$0xff]
        %v1894 = vld [vmem:[%s395 + $0x60] sm:$0xff]
        %v1895 = vld [vmem:[%s395 + $0x68] sm:$0xff]
        %v1896 = vld [vmem:[%s395 + $0xa0] sm:$0xff]
        %v1897 = vld [vmem:[%s395 + $0xa8] sm:$0xff]
        %v1898 = vld [vmem:[%s395 + $0xe0] sm:$0xff]
        %v1899 = vld [vmem:[%s395 + $0xe8] sm:$0xff]
        %v1908 = vunpack.c.l.b16 %v1892
        %v1909 = vunpack.c.h.b16 %v1892
        %v1910 = vunpack.c.l.b16 %v1893
        %v1911 = vunpack.c.h.b16 %v1893
        %v1912 = vunpack.c.l.b16 %v1894
        %v1913 = vunpack.c.h.b16 %v1894
        %v1914 = vunpack.c.l.b16 %v1895
        %v1915 = vunpack.c.h.b16 %v1895
        %v1916 = vunpack.c.l.b16 %v1896
        %v1917 = vunpack.c.h.b16 %v1896
        %v1918 = vunpack.c.l.b16 %v1897
        %v1919 = vunpack.c.h.b16 %v1897
        %v1920 = vunpack.c.l.b16 %v1898
        %v1921 = vunpack.c.h.b16 %v1898
        %v1922 = vunpack.c.l.b16 %v1899
        %v1923 = vunpack.c.h.b16 %v1899
        %v1924 = vpack.c.b16 %v1912, %v1908
        %v1925 = vpack.c.b16 %v1913, %v1909
        %v1926 = vpack.c.b16 %v1914, %v1910
        %v1927 = vpack.c.b16 %v1915, %v1911
        %v1928 = vpack.c.b16 %v1920, %v1916
        %v1929 = vpack.c.b16 %v1921, %v1917
        %v1930 = vpack.c.b16 %v1922, %v1918
        %v1931 = vpack.c.b16 %v1923, %v1919
        %1940 = vmatprep.subr.bf16.mxu0 %v1925
        %1941 = vmatpush1.bf16.xpose.msra.mxu0 %v1924
        %1942 = vmatprep.subr.bf16.mxu0 %v1929
        %1943 = vmatpush1.bf16.xpose.msra.mxu0 %v1928
        %1944 = vmatprep.subr.bf16.mxu0 0
        %1945 = vmatpush1.bf16.xpose.msra.mxu0 0
        %1946 = vmatprep.subr.bf16.mxu0 0
        %1947 = vmatpush1.bf16.xpose.msra.mxu0 0
        %1948 = vmatprep.subr.bf16.mxu0 0
        %1949 = vmatpush1.bf16.xpose.msra.mxu0 0
        %1950 = vmatprep.subr.bf16.mxu0 0
        %1951 = vmatpush1.bf16.xpose.msra.mxu0 0
        %1952 = vmatprep.subr.bf16.mxu0 0
        %1953 = vmatpush1.bf16.xpose.msra.mxu0 0
        %1954 = vmatprep.subr.bf16.mxu0 0
        %1955 = vmatpush1.bf16.xpose.msra.mxu0 0
        %1956 = vmatprep.subr.bf16.mxu0 0
        %1957 = vmatpush1.bf16.xpose.msra.mxu0 0
        %1958 = vmatprep.subr.bf16.mxu0 0
        %1959 = vmatpush1.bf16.xpose.msra.mxu0 0
        %1960 = vmatprep.subr.bf16.mxu0 0
        %1961 = vmatpush1.bf16.xpose.msra.mxu0 0
        %1962 = vmatprep.subr.bf16.mxu0 0
        %1963 = vmatpush1.bf16.xpose.msra.mxu0 0
        %1964 = vmatprep.subr.bf16.mxu0 0
        %1965 = vmatpush1.bf16.xpose.msra.mxu0 0
        %1966 = vmatprep.subr.bf16.mxu0 0
        %1967 = vmatpush1.bf16.xpose.msra.mxu0 0
        %1968 = vmatprep.subr.bf16.mxu0 0
        %1969 = vmatpush1.bf16.xpose.msra.mxu0 0
        %1970 = vmatprep.subr.bf16.mxu0 0
        %1971 = vmatpush1.bf16.xpose.msra.mxu0 0
        %1972 = vmatprep.mubr.bf16.mxu0 %v1889
        %1973 = vmatmul.mubr.bf16.gmra.mrb[0].mxu0 %v1888
        %v1974 = vpop.f32.mrb[0].mxu0
        %v1975 = vadd.f32 0.0, %v1974
        %v1976 = vpop.f32.mrb[0].mxu0
        %v1977 = vpop.f32.mrb[0].mxu0
        %v1978 = vadd.f32 0.0, %v1977
        %v1979 = vpop.f32.mrb[0].mxu0
        %1980 = vdwg.mxu0
        %1981 = vmatprep.subr.bf16.mxu0 %v1927
        %1982 = vmatpush1.bf16.xpose.msra.mxu0 %v1926
        %1983 = vmatprep.subr.bf16.mxu0 %v1931
        %1984 = vmatpush1.bf16.xpose.msra.mxu0 %v1930
        %1985 = vmatprep.subr.bf16.mxu0 0
        %1986 = vmatpush1.bf16.xpose.msra.mxu0 0
        %1987 = vmatprep.subr.bf16.mxu0 0
        %1988 = vmatpush1.bf16.xpose.msra.mxu0 0
        %1989 = vmatprep.subr.bf16.mxu0 0
        %1990 = vmatpush1.bf16.xpose.msra.mxu0 0
        %1991 = vmatprep.subr.bf16.mxu0 0
        %1992 = vmatpush1.bf16.xpose.msra.mxu0 0
        %1993 = vmatprep.subr.bf16.mxu0 0
        %1994 = vmatpush1.bf16.xpose.msra.mxu0 0
        %1995 = vmatprep.subr.bf16.mxu0 0
        %1996 = vmatpush1.bf16.xpose.msra.mxu0 0
        %1997 = vmatprep.subr.bf16.mxu0 0
        %1998 = vmatpush1.bf16.xpose.msra.mxu0 0
        %1999 = vmatprep.subr.bf16.mxu0 0
        %2000 = vmatpush1.bf16.xpose.msra.mxu0 0
        %2001 = vmatprep.subr.bf16.mxu0 0
        %2002 = vmatpush1.bf16.xpose.msra.mxu0 0
        %2003 = vmatprep.subr.bf16.mxu0 0
        %2004 = vmatpush1.bf16.xpose.msra.mxu0 0
        %2005 = vmatprep.subr.bf16.mxu0 0
        %2006 = vmatpush1.bf16.xpose.msra.mxu0 0
        %2007 = vmatprep.subr.bf16.mxu0 0
        %2008 = vmatpush1.bf16.xpose.msra.mxu0 0
        %2009 = vmatprep.subr.bf16.mxu0 0
        %2010 = vmatpush1.bf16.xpose.msra.mxu0 0
        %2011 = vmatprep.subr.bf16.mxu0 0
        %2012 = vmatpush1.bf16.xpose.msra.mxu0 0
        %2013 = vmatprep.mubr.bf16.mxu0 %v1891
        %2014 = vmatmul.mubr.bf16.gmra.mrb[0].mxu0 %v1890
        %v2015 = vpop.f32.mrb[0].mxu0
        %v2016 = vadd.f32 %v1975, %v2015
        %v2017 = vpop.f32.mrb[0].mxu0
        %v2018 = vpop.f32.mrb[0].mxu0
        %v2019 = vadd.f32 %v1978, %v2018
        %v2020 = vpop.f32.mrb[0].mxu0
        %2021 = vdwg.mxu0
        %v2022 = vadd.f32 %v1718, %v2016
        %v2023 = vadd.f32 %v1721, %v2019
        %v2024 = vld [vmem:[%s386 + $0x30] sm:$0xff]
        %v2025 = vld [vmem:[%s386 + $0x38] sm:$0xff]
        %v2026 = vld [vmem:[%s386 + $0x70] sm:$0xff]
        %v2027 = vld [vmem:[%s386 + $0x78] sm:$0xff]
        %v2028 = vld [vmem:[%s386 + $0xb0] sm:$0xff]
        %v2029 = vld [vmem:[%s386 + $0xb8] sm:$0xff]
        %v2030 = vld [vmem:[%s386 + $0xf0] sm:$0xff]
        %v2031 = vld [vmem:[%s386 + $0xf8] sm:$0xff]
        %v2032 = vld [vmem:[%s455 + $0xc] sm:$0xf]
        %v2034 = vlaneseq
        %v2035 = vshrl.u32 %v2034, 7
        %v2036 = vsub.s32 0, %v2035
        %v2037 = vrot.slane %v2032, %v2036
        %v2038 = vlaneseq
        %v2039 = vshrl.u32 %v2038, 7
        %v2040 = vsub.s32 1, %v2039
        %v2041 = vrot.slane %v2032, %v2040
        %v2042 = vlaneseq
        %v2043 = vshrl.u32 %v2042, 7
        %v2044 = vsub.s32 2, %v2043
        %v2045 = vrot.slane %v2032, %v2044
        %v2046 = vlaneseq
        %v2047 = vshrl.u32 %v2046, 7
        %v2048 = vsub.s32 3, %v2047
        %v2049 = vrot.slane %v2032, %v2048
        %v2062 = vunpack.c.l.b16 %v2024
        %v2063 = vunpack.c.h.b16 %v2024
        %v2064 = vunpack.c.l.b16 %v2025
        %v2065 = vunpack.c.h.b16 %v2025
        %v2066 = vunpack.c.l.b16 %v2026
        %v2067 = vunpack.c.h.b16 %v2026
        %v2068 = vunpack.c.l.b16 %v2027
        %v2069 = vunpack.c.h.b16 %v2027
        %v2070 = vunpack.c.l.b16 %v2028
        %v2071 = vunpack.c.h.b16 %v2028
        %v2072 = vunpack.c.l.b16 %v2029
        %v2073 = vunpack.c.h.b16 %v2029
        %v2074 = vunpack.c.l.b16 %v2030
        %v2075 = vunpack.c.h.b16 %v2030
        %v2076 = vunpack.c.l.b16 %v2031
        %v2077 = vunpack.c.h.b16 %v2031
        %v2078 = vpack.c.b16 %v2066, %v2062
        %v2079 = vpack.c.b16 %v2067, %v2063
        %v2080 = vpack.c.b16 %v2068, %v2064
        %v2081 = vpack.c.b16 %v2069, %v2065
        %v2082 = vpack.c.b16 %v2074, %v2070
        %v2083 = vpack.c.b16 %v2075, %v2071
        %v2084 = vpack.c.b16 %v2076, %v2072
        %v2085 = vpack.c.b16 %v2077, %v2073
        %2094 = vmatprep.subr.bf16.mxu0 %v2079
        %2095 = vmatpush1.bf16.msra.mxu0 %v2078
        %2096 = vmatprep.subr.bf16.mxu0 %v2083
        %2097 = vmatpush1.bf16.msra.mxu0 %v2082
        %2098 = vmatprep.subr.bf16.mxu0 0
        %2099 = vmatpush1.bf16.msra.mxu0 0
        %2100 = vmatprep.subr.bf16.mxu0 0
        %2101 = vmatpush1.bf16.msra.mxu0 0
        %2102 = vmatprep.subr.bf16.mxu0 0
        %2103 = vmatpush1.bf16.msra.mxu0 0
        %2104 = vmatprep.subr.bf16.mxu0 0
        %2105 = vmatpush1.bf16.msra.mxu0 0
        %2106 = vmatprep.subr.bf16.mxu0 0
        %2107 = vmatpush1.bf16.msra.mxu0 0
        %2108 = vmatprep.subr.bf16.mxu0 0
        %2109 = vmatpush1.bf16.msra.mxu0 0
        %2110 = vmatprep.subr.bf16.mxu0 0
        %2111 = vmatpush1.bf16.msra.mxu0 0
        %2112 = vmatprep.subr.bf16.mxu0 0
        %2113 = vmatpush1.bf16.msra.mxu0 0
        %2114 = vmatprep.subr.bf16.mxu0 0
        %2115 = vmatpush1.bf16.msra.mxu0 0
        %2116 = vmatprep.subr.bf16.mxu0 0
        %2117 = vmatpush1.bf16.msra.mxu0 0
        %2118 = vmatprep.subr.bf16.mxu0 0
        %2119 = vmatpush1.bf16.msra.mxu0 0
        %2120 = vmatprep.subr.bf16.mxu0 0
        %2121 = vmatpush1.bf16.msra.mxu0 0
        %2122 = vmatprep.subr.bf16.mxu0 0
        %2123 = vmatpush1.bf16.msra.mxu0 0
        %2124 = vmatprep.subr.bf16.mxu0 0
        %2125 = vmatpush1.bf16.msra.mxu0 0
        %2126 = vmatprep.mubr.bf16.mxu0 0
        %2127 = vmatmul.mubr.bf16.gmra.mrb[0].mxu0 %v1196
        %v2128 = vpop.f32.mrb[0].mxu0
        %v2129 = vadd.f32 %v2037, %v2128
        %v2130 = vpop.f32.mrb[0].mxu0
        %v2131 = vadd.f32 %v2041, %v2130
        %v2132 = vpop.f32.mrb[0].mxu0
        %v2133 = vadd.f32 %v2037, %v2132
        %v2134 = vpop.f32.mrb[0].mxu0
        %v2135 = vadd.f32 %v2041, %v2134
        %2136 = vdwg.mxu0
        %2137 = vmatprep.subr.bf16.mxu0 %v2081
        %2138 = vmatpush1.bf16.msra.mxu0 %v2080
        %2139 = vmatprep.subr.bf16.mxu0 %v2085
        %2140 = vmatpush1.bf16.msra.mxu0 %v2084
        %2141 = vmatprep.subr.bf16.mxu0 0
        %2142 = vmatpush1.bf16.msra.mxu0 0
        %2143 = vmatprep.subr.bf16.mxu0 0
        %2144 = vmatpush1.bf16.msra.mxu0 0
        %2145 = vmatprep.subr.bf16.mxu0 0
        %2146 = vmatpush1.bf16.msra.mxu0 0
        %2147 = vmatprep.subr.bf16.mxu0 0
        %2148 = vmatpush1.bf16.msra.mxu0 0
        %2149 = vmatprep.subr.bf16.mxu0 0
        %2150 = vmatpush1.bf16.msra.mxu0 0
        %2151 = vmatprep.subr.bf16.mxu0 0
        %2152 = vmatpush1.bf16.msra.mxu0 0
        %2153 = vmatprep.subr.bf16.mxu0 0
        %2154 = vmatpush1.bf16.msra.mxu0 0
        %2155 = vmatprep.subr.bf16.mxu0 0
        %2156 = vmatpush1.bf16.msra.mxu0 0
        %2157 = vmatprep.subr.bf16.mxu0 0
        %2158 = vmatpush1.bf16.msra.mxu0 0
        %2159 = vmatprep.subr.bf16.mxu0 0
        %2160 = vmatpush1.bf16.msra.mxu0 0
        %2161 = vmatprep.subr.bf16.mxu0 0
        %2162 = vmatpush1.bf16.msra.mxu0 0
        %2163 = vmatprep.subr.bf16.mxu0 0
        %2164 = vmatpush1.bf16.msra.mxu0 0
        %2165 = vmatprep.subr.bf16.mxu0 0
        %2166 = vmatpush1.bf16.msra.mxu0 0
        %2167 = vmatprep.subr.bf16.mxu0 0
        %2168 = vmatpush1.bf16.msra.mxu0 0
        %2169 = vmatprep.mubr.bf16.mxu0 0
        %2170 = vmatmul.mubr.bf16.gmra.mrb[0].mxu0 %v1196
        %v2171 = vpop.f32.mrb[0].mxu0
        %v2172 = vadd.f32 %v2045, %v2171
        %v2173 = vpop.f32.mrb[0].mxu0
        %v2174 = vadd.f32 %v2049, %v2173
        %v2175 = vpop.f32.mrb[0].mxu0
        %v2176 = vadd.f32 %v2045, %v2175
        %v2177 = vpop.f32.mrb[0].mxu0
        %v2178 = vadd.f32 %v2049, %v2177
        %2179 = vdwg.mxu0
        %v2180 = vmax.f32 %v2129, 0.0
        %v2181 = vmax.f32 %v2131, 0.0
        %v2182 = vmax.f32 %v2172, 0.0
        %v2183 = vmax.f32 %v2174, 0.0
        %v2184 = vmax.f32 %v2133, 0.0
        %v2185 = vmax.f32 %v2135, 0.0
        %v2186 = vmax.f32 %v2176, 0.0
        %v2187 = vmax.f32 %v2178, 0.0
        %v2188 = vpack.c.bf16 %v2184, %v2180
        %v2189 = vpack.c.bf16 %v2185, %v2181
        %v2190 = vpack.c.bf16 %v2186, %v2182
        %v2191 = vpack.c.bf16 %v2187, %v2183
        %v2192 = vld [vmem:[%s395 + $0x30] sm:$0xff]
        %v2193 = vld [vmem:[%s395 + $0x38] sm:$0xff]
        %v2194 = vld [vmem:[%s395 + $0x70] sm:$0xff]
        %v2195 = vld [vmem:[%s395 + $0x78] sm:$0xff]
        %v2196 = vld [vmem:[%s395 + $0xb0] sm:$0xff]
        %v2197 = vld [vmem:[%s395 + $0xb8] sm:$0xff]
        %v2198 = vld [vmem:[%s395 + $0xf0] sm:$0xff]
        %v2199 = vld [vmem:[%s395 + $0xf8] sm:$0xff]
        %v2208 = vunpack.c.l.b16 %v2192
        %v2209 = vunpack.c.h.b16 %v2192
        %v2210 = vunpack.c.l.b16 %v2193
        %v2211 = vunpack.c.h.b16 %v2193
        %v2212 = vunpack.c.l.b16 %v2194
        %v2213 = vunpack.c.h.b16 %v2194
        %v2214 = vunpack.c.l.b16 %v2195
        %v2215 = vunpack.c.h.b16 %v2195
        %v2216 = vunpack.c.l.b16 %v2196
        %v2217 = vunpack.c.h.b16 %v2196
        %v2218 = vunpack.c.l.b16 %v2197
        %v2219 = vunpack.c.h.b16 %v2197
        %v2220 = vunpack.c.l.b16 %v2198
        %v2221 = vunpack.c.h.b16 %v2198
        %v2222 = vunpack.c.l.b16 %v2199
        %v2223 = vunpack.c.h.b16 %v2199
        %v2224 = vpack.c.b16 %v2212, %v2208
        %v2225 = vpack.c.b16 %v2213, %v2209
        %v2226 = vpack.c.b16 %v2214, %v2210
        %v2227 = vpack.c.b16 %v2215, %v2211
        %v2228 = vpack.c.b16 %v2220, %v2216
        %v2229 = vpack.c.b16 %v2221, %v2217
        %v2230 = vpack.c.b16 %v2222, %v2218
        %v2231 = vpack.c.b16 %v2223, %v2219
        %2240 = vmatprep.subr.bf16.mxu0 %v2225
        %2241 = vmatpush1.bf16.xpose.msra.mxu0 %v2224
        %2242 = vmatprep.subr.bf16.mxu0 %v2229
        %2243 = vmatpush1.bf16.xpose.msra.mxu0 %v2228
        %2244 = vmatprep.subr.bf16.mxu0 0
        %2245 = vmatpush1.bf16.xpose.msra.mxu0 0
        %2246 = vmatprep.subr.bf16.mxu0 0
        %2247 = vmatpush1.bf16.xpose.msra.mxu0 0
        %2248 = vmatprep.subr.bf16.mxu0 0
        %2249 = vmatpush1.bf16.xpose.msra.mxu0 0
        %2250 = vmatprep.subr.bf16.mxu0 0
        %2251 = vmatpush1.bf16.xpose.msra.mxu0 0
        %2252 = vmatprep.subr.bf16.mxu0 0
        %2253 = vmatpush1.bf16.xpose.msra.mxu0 0
        %2254 = vmatprep.subr.bf16.mxu0 0
        %2255 = vmatpush1.bf16.xpose.msra.mxu0 0
        %2256 = vmatprep.subr.bf16.mxu0 0
        %2257 = vmatpush1.bf16.xpose.msra.mxu0 0
        %2258 = vmatprep.subr.bf16.mxu0 0
        %2259 = vmatpush1.bf16.xpose.msra.mxu0 0
        %2260 = vmatprep.subr.bf16.mxu0 0
        %2261 = vmatpush1.bf16.xpose.msra.mxu0 0
        %2262 = vmatprep.subr.bf16.mxu0 0
        %2263 = vmatpush1.bf16.xpose.msra.mxu0 0
        %2264 = vmatprep.subr.bf16.mxu0 0
        %2265 = vmatpush1.bf16.xpose.msra.mxu0 0
        %2266 = vmatprep.subr.bf16.mxu0 0
        %2267 = vmatpush1.bf16.xpose.msra.mxu0 0
        %2268 = vmatprep.subr.bf16.mxu0 0
        %2269 = vmatpush1.bf16.xpose.msra.mxu0 0
        %2270 = vmatprep.subr.bf16.mxu0 0
        %2271 = vmatpush1.bf16.xpose.msra.mxu0 0
        %2272 = vmatprep.mubr.bf16.mxu0 %v2189
        %2273 = vmatmul.mubr.bf16.gmra.mrb[0].mxu0 %v2188
        %v2274 = vpop.f32.mrb[0].mxu0
        %v2275 = vadd.f32 0.0, %v2274
        %v2276 = vpop.f32.mrb[0].mxu0
        %v2277 = vpop.f32.mrb[0].mxu0
        %v2278 = vadd.f32 0.0, %v2277
        %v2279 = vpop.f32.mrb[0].mxu0
        %2280 = vdwg.mxu0
        %2281 = vmatprep.subr.bf16.mxu0 %v2227
        %2282 = vmatpush1.bf16.xpose.msra.mxu0 %v2226
        %2283 = vmatprep.subr.bf16.mxu0 %v2231
        %2284 = vmatpush1.bf16.xpose.msra.mxu0 %v2230
        %2285 = vmatprep.subr.bf16.mxu0 0
        %2286 = vmatpush1.bf16.xpose.msra.mxu0 0
        %2287 = vmatprep.subr.bf16.mxu0 0
        %2288 = vmatpush1.bf16.xpose.msra.mxu0 0
        %2289 = vmatprep.subr.bf16.mxu0 0
        %2290 = vmatpush1.bf16.xpose.msra.mxu0 0
        %2291 = vmatprep.subr.bf16.mxu0 0
        %2292 = vmatpush1.bf16.xpose.msra.mxu0 0
        %2293 = vmatprep.subr.bf16.mxu0 0
        %2294 = vmatpush1.bf16.xpose.msra.mxu0 0
        %2295 = vmatprep.subr.bf16.mxu0 0
        %2296 = vmatpush1.bf16.xpose.msra.mxu0 0
        %2297 = vmatprep.subr.bf16.mxu0 0
        %2298 = vmatpush1.bf16.xpose.msra.mxu0 0
        %2299 = vmatprep.subr.bf16.mxu0 0
        %2300 = vmatpush1.bf16.xpose.msra.mxu0 0
        %2301 = vmatprep.subr.bf16.mxu0 0
        %2302 = vmatpush1.bf16.xpose.msra.mxu0 0
        %2303 = vmatprep.subr.bf16.mxu0 0
        %2304 = vmatpush1.bf16.xpose.msra.mxu0 0
        %2305 = vmatprep.subr.bf16.mxu0 0
        %2306 = vmatpush1.bf16.xpose.msra.mxu0 0
        %2307 = vmatprep.subr.bf16.mxu0 0
        %2308 = vmatpush1.bf16.xpose.msra.mxu0 0
        %2309 = vmatprep.subr.bf16.mxu0 0
        %2310 = vmatpush1.bf16.xpose.msra.mxu0 0
        %2311 = vmatprep.subr.bf16.mxu0 0
        %2312 = vmatpush1.bf16.xpose.msra.mxu0 0
        %2313 = vmatprep.mubr.bf16.mxu0 %v2191
        %2314 = vmatmul.mubr.bf16.gmra.mrb[0].mxu0 %v2190
        %v2315 = vpop.f32.mrb[0].mxu0
        %v2316 = vadd.f32 %v2275, %v2315
        %v2317 = vpop.f32.mrb[0].mxu0
        %v2318 = vpop.f32.mrb[0].mxu0
        %v2319 = vadd.f32 %v2278, %v2318
        %v2320 = vpop.f32.mrb[0].mxu0
        %2321 = vdwg.mxu0
        %v2322 = vadd.f32 %v2022, %v2316
        %v2323 = vadd.f32 %v2023, %v2319
        %v2324 = vadd.f32 %v1122, %v2322
        %v2325 = vadd.f32 %v1123, %v2323
        %v2326 = vlaneseq
        %v2327 = vshrl.u32 %v2326, 7
        %v2328 = vsub.s32 4, %v2327
        %v2329 = vrot.slane %v475, %v2328
        %v2330 = vadd.f32 %v2324, %v2329
        %v2331 = vadd.f32 %v2325, %v2329
        %v2332 = vsel %vm481, %v2330, 0.0
        %2333 = vadd.xlane.f32.xlu0 %v2332
        %v2334 = vpop.xlane.xlu0 %2333
        %v2335 = vsel %vm481, %v2331, 0.0
        %2336 = vadd.xlane.f32.xlu0 %v2335
        %v2337 = vpop.xlane.xlu0 %2336
        %v2338 = vmul.f32 %v2334, %v1091
        %v2339 = vmul.f32 %v2337, %v1091
        %v2340 = vsub.f32 %v2330, %v2338
        %v2341 = vsub.f32 %v2331, %v2339
        %v2342 = vmul.f32 %v2340, %v2340
        %v2343 = vmul.f32 %v2341, %v2341
        %v2344 = vsel %vm481, %v2342, 0.0
        %2345 = vadd.xlane.f32.xlu0 %v2344
        %v2346 = vpop.xlane.xlu0 %2345
        %v2347 = vsel %vm481, %v2343, 0.0
        %2348 = vadd.xlane.f32.xlu0 %v2347
        %v2349 = vpop.xlane.xlu0 %2348
        %v2350 = vmul.f32 %v2346, %v1091
        %v2351 = vmul.f32 %v2349, %v1091
        %v2352 = vadd.f32 %v2350, 1e-05
        %v2353 = vadd.f32 %v2351, 1e-05
        %v2354 = vrsqrt.pop %v2352
        %v2355 = vrsqrt.pop %v2353
        %v2356 = vmul.f32 %v2340, %v2354
        %v2357 = vmul.f32 %v2341, %v2355
        %v2358 = vlaneseq
        %v2359 = vshrl.u32 %v2358, 7
        %v2360 = vsub.s32 7, %v2359
        %v2361 = vrot.slane %v475, %v2360
        %v2362 = vmul.f32 %v2356, %v2361
        %v2363 = vmul.f32 %v2357, %v2361
        %v2364 = vlaneseq
        %v2365 = vshrl.u32 %v2364, 7
        %v2366 = vsub.s32 0, %v2365
        %v2367 = vrot.slane %v476, %v2366
        %v2368 = vadd.f32 %v2362, %v2367
        %v2369 = vadd.f32 %v2363, %v2367
        %2370 = vst.msk [vmem:[#allocation2] sm:$0xff] %vm481, %v2368
        %2371 = vst.msk [vmem:[#allocation2 + $0x8] sm:$0xff] %vm481, %v2369
        %p2372 = scmp.eq.s32.totalorder %s27, 1
        // Predicated region
        $region73: #{simple_transformer_forward.1} parent=51 // pred_check
          %p2373 = pneg %p2372
        $region74: #{simple_transformer_forward.1} parent=51 // pred_check_branch
          %2375 = sbr.rel (%p2373) target = $region76
        $region75: #{simple_transformer_forward.1} parent=51 // pred_region
          %2376 = vst.msk [vmem:[#allocation11] sm:$0xff] %vm481, %v2368
          %2377 = vst.msk [vmem:[#allocation11 + $0x8] sm:$0xff] %vm481, %v2369
        $region76: #{simple_transformer_forward.1} parent=51 // pred_fallthru
          _
        // Predicated region
        $region77: #{simple_transformer_forward.1} parent=51 // pred_check
          %p2378 = pneg %p238
        $region78: #{simple_transformer_forward.1} parent=51 // pred_check_branch
          %2380 = sbr.rel (%p2378) target = $region80
        $region79: #{simple_transformer_forward.1} parent=51 // pred_region
          %s2382 = ssub.s32 256, 256
          %2383 = vsyncadd [#allocation5], %s2382
          %s2384 = sshll.u32 [#allocation11], 4
          %s2385 = int_to_ptr.vmem [resolvable:$true] %s2384
          %2390 = dma.vmem_to_hbm [thread:$0]  %s2385, 256, %s8, [#allocation5], 128, 128, 8
        $region80: #{simple_transformer_forward.1} parent=51 // pred_fallthru
          _
        // Predicated region
        $region81: #{simple_transformer_forward.1} parent=51 // pred_check
          %p2391 = pneg %p238
        $region82: #{simple_transformer_forward.1} parent=51 // pred_check_branch
          %2393 = sbr.rel (%p2391) target = $region84
        $region83: #{simple_transformer_forward.1} parent=51 // pred_region
          %2394 = dma.done [#allocation5], 256
        $region84: #{simple_transformer_forward.1} parent=51 // pred_fallthru
          _
      $region52: #{simple_transformer_forward.1} parent=5 // pred_fallthru
        _
      %p2395 = scmp.le.s32.totalorder 2, %s22
      // Predicated region
      $region85: #{simple_transformer_forward.1} parent=5 // pred_check
        %p2396 = pneg %p2395
      $region86: #{simple_transformer_forward.1} parent=5 // pred_check_branch
        %2398 = sbr.rel (%p2396) target = $region88
      $region87: #{simple_transformer_forward.1} parent=5 // pred_region
        %s2399 = ssub.s32 %s22, 2
      $region88: #{simple_transformer_forward.1} parent=5 // pred_fallthru
        _
    $region6: #{simple_transformer_forward.1} parent=1 // loop_footer
      %s26 = sadd.s32 1, %s22
    $region7: #{simple_transformer_forward.1} parent=1 // loop_footer_branch
      %21 = sbr.rel target = $region3
    $region8: #{simple_transformer_forward.1} parent=1 // loop_exit
      _
    %2400 = vsyncpa [#allocation4], 1
    %s2401 = scalar_lea.sflag [#allocation4], 1
    %2402 = vsyncpa %s2401, 1
    %2403 = vsyncpa [#allocation7], 1
    %s2404 = scalar_lea.sflag [#allocation7], 1
    %2405 = vsyncpa %s2404, 1
    %2406 = vsyncpa [#allocation10], 1
    %s2407 = scalar_lea.sflag [#allocation10], 1
    %2408 = vsyncpa %s2407, 1
    %2409 = vsyncpa [#allocation5], 1
    %s2410 = scalar_lea.sflag [#allocation5], 1
    %2411 = vsyncpa %s2410, 1

</llo_original>
